<compile_context>
chip_gen: v7x
topology: tpu7x:2x2x1
jax: 0.10.0
libtpu: 0.0.40
codegen_flags: <defaults>
</compile_context>

<pallas_src>
import functools

import jax
import jax.numpy as jnp
from jax.experimental import pallas as pl
from jax.experimental.pallas import tpu as pltpu

_MIB = 1024 * 1024


def _round_up(x, m):
    return ((x + m - 1) // m) * m


def _stable_softplus(x):
    # softplus(x) = log1p(exp(-|x|)) + max(x, 0)   (no overflow for large x)
    return jnp.log1p(jnp.exp(-jnp.abs(x))) + jnp.maximum(x, 0.0)


def _mish(x):
    # Mish(x) = x * tanh(softplus(x))
    return x * jnp.tanh(_stable_softplus(x))


def _embed_kernel(hs_ref, w_ref, b_ref, q_out_ref, a_out_ref, acc_ref,
                  *, inv_s, hidden, normalize):
    """Grid = (batch_tiles, seq_tiles); seq is the (last, 'arbitrary') reduction axis.

    hs_ref : (TB, TS, H)  hidden-states tile (streamed, dtype of the input)
    w_ref  : (H, 2H)      fused [Wq.T | Wa.T]   (resident, bf16 by default)
    b_ref  : (1, 2H)      fused [bq | ba]
    acc_ref: (TB, H) f32  running seq-sum accumulator (scratch)
    """
    s = pl.program_id(1)

    @pl.when(s == 0)
    def _():
        acc_ref[...] = jnp.zeros_like(acc_ref)

    # Accumulate the sequence sum in f32 (mean = sum * 1/S at the end).
    acc_ref[...] += jnp.sum(hs_ref[...].astype(jnp.float32), axis=1)

    @pl.when(s == pl.num_programs(1) - 1)
    def _():
        pooled = acc_ref[...] * inv_s                        # (TB, H)  == .mean(1)

        # Single fused matmul for both FnnLayers; weights stay in their native
        # (bf16/f32) dtype -> native MXU path, f32 accumulation.
        w = w_ref[...]
        y = jnp.dot(pooled.astype(w.dtype), w,
                    preferred_element_type=jnp.float32)
        y = y + b_ref[...].astype(jnp.float32)               # bias broadcast (1, 2H)
        y = _mish(y)                                         # dropout = identity (eval)

        q = y[:, :hidden] + pooled                           # residual adds (f32)
        a = y[:, hidden:] + pooled

        if normalize:
            q = q * jax.lax.rsqrt(jnp.sum(q * q, axis=1, keepdims=True))
            a = a * jax.lax.rsqrt(jnp.sum(a * a, axis=1, keepdims=True))

        q_out_ref[...] = q.astype(q_out_ref.dtype)
        a_out_ref[...] = a.astype(a_out_ref.dtype)


def roberta_qa_embed(q_hidden_states, params, *, normalize=True,
                     batch_tile=128, seq_tile=None,
                     weight_dtype=jnp.bfloat16):
    """q_hidden_states: (B, S, H) — output of RoBERTa extract_features.

    Returns (q_embed, a_embed), each (B, H) float32.
    """
    # TODO(synk): the RoBERTa encoder (state-dict load, transformer stack) has no
    # clean in-script Pallas equivalent; the kernel starts from its features.
    B, S, H = q_hidden_states.shape
    hs_itemsize = jnp.dtype(q_hidden_states.dtype).itemsize
    w_itemsize = jnp.dtype(weight_dtype).itemsize

    # Fuse the two Linear layers once in the wrapper:
    #   PyTorch Linear stores W as (out, in); transpose -> (in, out) and concat.
    # TODO(synk): for H >= ~1536 on v7x (64 MiB VMEM) additionally column-tile
    # the fused (H, 2H) weight instead of keeping the whole slab resident.
    w_qa = jnp.concatenate([params["wq"].T, params["wa"].T],
                           axis=1).astype(weight_dtype)                 # (H, 2H)
    b_qa = jnp.concatenate([params["bq"].reshape(1, H),
                            params["ba"].reshape(1, H)],
                           axis=1).astype(weight_dtype)                 # (1, 2H)

    # ---- per-generation VMEM budget -------------------------------------
    try:
        vmem_cap = int(pltpu.get_tpu_info().vmem_capacity_bytes)
    except Exception:
        vmem_cap = 64 * _MIB                         # conservative (v7x-sized)
    vmem_limit = max(32 * _MIB, min((vmem_cap * 3) // 4, 100 * _MIB))
    per_buf_cap = 8 * _MIB if vmem_cap <= 64 * _MIB else 16 * _MIB

    # ---- batch tile ------------------------------------------------------
    tb = min(batch_tile, _round_up(B, 8))
    tb = max(8, (tb // 8) * 8)
    # v7x megacore: make sure there are >= 2 batch tiles (both TCs get work).
    if _round_up(B, tb) // tb < 2 and tb > 8:
        tb = max(8, _round_up((B + 1) // 2, 8))
    B_pad = _round_up(B, tb)

    # ---- seq tile (two pipelined hs buffers must fit the budget) ---------
    seq_mult = {1: 32, 2: 16, 4: 8}.get(hs_itemsize, 8)
    w_resident = 2 * (H * 2 * H + 2 * H) * w_itemsize     # conservative: 2 bufs
    misc = 8 * tb * H * 4 + 2 * _MIB                      # acc/outs/pooled/y + slack
    avail = max(2 * _MIB, vmem_limit - w_resident - misc)
    per_buf = max(512 * 1024, min(per_buf_cap, avail // 2))

    ts = per_buf // max(1, tb * H * hs_itemsize)
    if seq_tile is not None:
        ts = min(ts, seq_tile)
    ts = max(seq_mult, (ts // seq_mult) * seq_mult)
    ts = min(ts, _round_up(S, seq_mult))
    S_pad = _round_up(S, ts)

    hs = q_hidden_states
    if B_pad != B or S_pad != S:
        # Zero padding is exact: zeros add nothing to the seq sum and the mean
        # uses 1/S (original). Padded batch rows are sliced off below.
        hs = jnp.pad(hs, ((0, B_pad - B), (0, S_pad - S), (0, 0)))

    grid = (B_pad // tb, S_pad // ts)
    kernel = functools.partial(_embed_kernel, inv_s=1.0 / S, hidden=H,
                               normalize=normalize)

    def _run(single_buffer_weights):
        # Constant-index weight/bias blocks only need a single buffer; this
        # frees VMEM for the streamed hidden-states double buffer.
        wkw = dict(pipeline_mode=pl.Buffered(1)) if single_buffer_weights else {}
        return pl.pallas_call(
            kernel,
            out_shape=(
                jax.ShapeDtypeStruct((B_pad, H), jnp.float32),
                jax.ShapeDtypeStruct((B_pad, H), jnp.float32),
            ),
            grid_spec=pltpu.PrefetchScalarGridSpec(
                num_scalar_prefetch=0,
                grid=grid,
                in_specs=[
                    # Streamed hidden states: (TB, TS, H) tile per grid step.
                    pl.BlockSpec((tb, ts, H), lambda b, s: (b, s, 0)),
                    # Fused weights / bias: constant index_map -> resident.
                    pl.BlockSpec((H, 2 * H), lambda b, s: (0, 0), **wkw),
                    pl.BlockSpec((1, 2 * H), lambda b, s: (0, 0), **wkw),
                ],
                out_specs=[
                    pl.BlockSpec((tb, H), lambda b, s: (b, 0)),
                    pl.BlockSpec((tb, H), lambda b, s: (b, 0)),
                ],
                scratch_shapes=[pltpu.VMEM((tb, H), jnp.float32)],
            ),
            compiler_params=pltpu.CompilerParams(
                dimension_semantics=("parallel", "arbitrary"),
                vmem_limit_bytes=vmem_limit,
            ),
        )(hs, w_qa, b_qa)

    try:
        q_pad, a_pad = _run(True)        # single-buffered resident weights
    except Exception:
        q_pad, a_pad = _run(False)       # safe fallback: default pipelining

    return q_pad[:B], a_pad[:B]


def _reference(hs, params, normalize=True):
    pooled = hs.astype(jnp.float32).mean(axis=1)

    def fnn(x, w, b):
        y = x @ w.T + b
        return y * jnp.tanh(jax.nn.softplus(y)) + x

    q = fnn(pooled, params["wq"], params["bq"])
    a = fnn(pooled, params["wa"], params["ba"])
    if normalize:
        q = q / jnp.linalg.norm(q, axis=1, keepdims=True)
        a = a / jnp.linalg.norm(a, axis=1, keepdims=True)
    return q, a


def _init_params(key, hidden):
    # Deterministic, PyTorch-Linear-style uniform(-1/sqrt(H), 1/sqrt(H)) init.
    kq_w, kq_b, ka_w, ka_b = jax.random.split(key, 4)
    bound = 1.0 / (hidden ** 0.5)
    u = lambda k, shape: jax.random.uniform(k, shape, jnp.float32, -bound, bound)
    return {
        "wq": u(kq_w, (hidden, hidden)),   # q_fnn_layer.dense.weight (out, in)
        "bq": u(kq_b, (1, hidden)),        # q_fnn_layer.dense.bias
        "wa": u(ka_w, (hidden, hidden)),   # a_fnn_layer.dense.weight
        "ba": u(ka_b, (1, hidden)),        # a_fnn_layer.dense.bias
    }


if __name__ == "__main__":
    key = jax.random.PRNGKey(0)
    k_hs, k_p, k_hs2 = jax.random.split(key, 3)

    H = 128
    params = _init_params(k_p, H)

    # Config 1: f32 hidden states + f32 weights (tight tolerance). Small tiles
    # are forced so the multi-seq-tile accumulation and the 2-batch-tile
    # (megacore) split are actually exercised: grid = (2, 4).
    B, S = 16, 256
    hs_f32 = jax.random.normal(k_hs, (B, S, H), dtype=jnp.float32)
    for norm in (True, False):
        q_embed, a_embed = roberta_qa_embed(
            hs_f32, params, normalize=norm, batch_tile=8, seq_tile=64,
            weight_dtype=jnp.float32)
        q_embed, a_embed = jax.block_until_ready((q_embed, a_embed))
        q_ref, a_ref = _reference(hs_f32, params, normalize=norm)
        assert jnp.allclose(q_embed, q_ref, atol=2e-5, rtol=2e-5), \
            f"q mismatch (f32, normalize={norm})"
        assert jnp.allclose(a_embed, a_ref, atol=2e-5, rtol=2e-5), \
            f"a mismatch (f32, normalize={norm})"

    # Config 2: bf16 hidden states streamed as-is + bf16 resident weights (the
    # bandwidth/VMEM-optimized default), with awkward B/S to exercise the
    # zero-padding path (B=12 -> 16, S=200 -> 240, grid = (2, 5)).
    B2, S2 = 12, 200
    hs_bf16 = jax.random.normal(k_hs2, (B2, S2, H),
                                dtype=jnp.float32).astype(jnp.bfloat16)
    q_embed, a_embed = roberta_qa_embed(hs_bf16, params, normalize=True,
                                        seq_tile=48)
    q_embed, a_embed = jax.block_until_ready((q_embed, a_embed))
    q_ref, a_ref = _reference(hs_bf16, params, normalize=True)
    assert jnp.allclose(q_embed, q_ref, atol=3e-2, rtol=3e-2), "q mismatch (bf16)"
    assert jnp.allclose(a_embed, a_ref, atol=3e-2, rtol=3e-2), "a mismatch (bf16)"

    print("KERNEL_OK")
</pallas_src>

<mosaic_0001>
module attributes {stable_mosaic.version = 11 : i64} {
  func.func @_embed_kernel(%arg0: i32, %arg1: i32, %arg2: memref<8x64x128xf32, #tpu.memory_space<vmem>>, %arg3: memref<128x256xf32, #tpu.memory_space<vmem>>, %arg4: memref<1x256xf32, #tpu.memory_space<vmem>>, %arg5: memref<8x128xf32, #tpu.memory_space<vmem>>, %arg6: memref<8x128xf32, #tpu.memory_space<vmem>>, %arg7: memref<8x128xf32, #tpu.memory_space<vmem>>) attributes {dimension_semantics = [#tpu.dimension_semantics<parallel>, #tpu.dimension_semantics<arbitrary>], iteration_bounds = array<i64: 2, 4>, scalar_prefetch = 0 : i64, scratch_operands = 1 : i64, tpu.core_type = #tpu.core_type<tc>, window_params = [{transform_indices = @transform_0, window_bounds = array<i64: 8, 64, 128>}, {pipeline_mode = #tpu.pipeline_mode<synchronous>, transform_indices = @transform_1, window_bounds = array<i64: 128, 256>}, {pipeline_mode = #tpu.pipeline_mode<synchronous>, transform_indices = @transform_2, window_bounds = array<i64: 1, 256>}, {transform_indices = @transform_3, window_bounds = array<i64: 8, 128>}, {transform_indices = @transform_4, window_bounds = array<i64: 8, 128>}]} {
    %c0_i32 = arith.constant 0 : i32
    %0 = arith.cmpi eq, %arg1, %c0_i32 : i32
    %1 = arith.extui %0 : i1 to i32
    %c0_i32_0 = arith.constant 0 : i32
    %2 = arith.cmpi ne, %1, %c0_i32_0 : i32
    scf.if %2 {
      %cst_8 = arith.constant 0.000000e+00 : f32
      %11 = vector.broadcast %cst_8 : f32 to vector<8x128xf32>
      %c0_9 = arith.constant 0 : index
      %c0_10 = arith.constant 0 : index
      %12 = vector.load %arg7[%c0_9, %c0_10] : memref<8x128xf32, #tpu.memory_space<vmem>>, vector<8x128xf32>
      tpu.vector_store %arg7[%c0_9, %c0_10], %11 {strides = array<i32>} : memref<8x128xf32, #tpu.memory_space<vmem>>, vector<8x128xf32>,
    } else {
    }
    %c0 = arith.constant 0 : index
    %c0_1 = arith.constant 0 : index
    %3 = vector.load %arg7[%c0, %c0_1] : memref<8x128xf32, #tpu.memory_space<vmem>>, vector<8x128xf32>
    %c0_2 = arith.constant 0 : index
    %c0_3 = arith.constant 0 : index
    %c0_4 = arith.constant 0 : index
    %4 = vector.load %arg2[%c0_2, %c0_3, %c0_4] : memref<8x64x128xf32, #tpu.memory_space<vmem>>, vector<8x64x128xf32>
    %cst = arith.constant dense<0.000000e+00> : vector<8x128xf32>
    %5 = vector.multi_reduction <add>, %4, %cst [1] : vector<8x64x128xf32> to vector<8x128xf32>
    %6 = arith.addf %3, %5 : vector<8x128xf32>
    %c0_5 = arith.constant 0 : index
    %c0_6 = arith.constant 0 : index
    %7 = vector.load %arg7[%c0_5, %c0_6] : memref<8x128xf32, #tpu.memory_space<vmem>>, vector<8x128xf32>
    tpu.vector_store %arg7[%c0_5, %c0_6], %6 {strides = array<i32>} : memref<8x128xf32, #tpu.memory_space<vmem>>, vector<8x128xf32>,
    %c3_i32 = arith.constant 3 : i32
    %8 = arith.cmpi eq, %arg1, %c3_i32 : i32
    %9 = arith.extui %8 : i1 to i32
    %c0_i32_7 = arith.constant 0 : i32
    %10 = arith.cmpi ne, %9, %c0_i32_7 : i32
    scf.if %10 {
      %c0_8 = arith.constant 0 : index
      %c0_9 = arith.constant 0 : index
      %11 = vector.load %arg7[%c0_8, %c0_9] : memref<8x128xf32, #tpu.memory_space<vmem>>, vector<8x128xf32>
      %cst_10 = arith.constant 3.906250e-03 : f32
      %12 = vector.broadcast %cst_10 : f32 to vector<8x128xf32>
      %13 = arith.mulf %11, %12 : vector<8x128xf32>
      %c0_11 = arith.constant 0 : index
      %c0_12 = arith.constant 0 : index
      %14 = vector.load %arg3[%c0_11, %c0_12] : memref<128x256xf32, #tpu.memory_space<vmem>>, vector<128x256xf32>
      %cst_13 = arith.constant dense<0.000000e+00> : vector<8x256xf32>
      %15 = tpu.matmul %13, %14, %cst_13 {dimension_numbers = #tpu.dot_dimension_numbers<[1], [0], [0], [1], [0, 0, 1, 1], [], []>} : vector<8x128xf32>, vector<128x256xf32>, vector<8x256xf32> -> vector<8x256xf32>
      %c0_14 = arith.constant 0 : index
      %c0_15 = arith.constant 0 : index
      %16 = vector.load %arg4[%c0_14, %c0_15] : memref<1x256xf32, #tpu.memory_space<vmem>>, vector<1x256xf32>
      %17 = vector.broadcast %16 : vector<1x256xf32> to vector<8x256xf32>
      %18 = arith.addf %15, %17 : vector<8x256xf32>
      %19 = math.absf %18 : vector<8x256xf32>
      %cst_16 = arith.constant 0.000000e+00 : f32
      %20 = vector.broadcast %cst_16 : f32 to vector<8x256xf32>
      %21 = arith.subf %20, %19 : vector<8x256xf32>
      %22 = math.exp %21 : vector<8x256xf32>
      %23 = math.log1p %22 : vector<8x256xf32>
      %cst_17 = arith.constant 0.000000e+00 : f32
      %24 = vector.broadcast %cst_17 : f32 to vector<8x256xf32>
      %25 = arith.maximumf %18, %24 : vector<8x256xf32>
      %26 = arith.addf %23, %25 : vector<8x256xf32>
      %27 = math.tanh %26 : vector<8x256xf32>
      %28 = arith.mulf %18, %27 : vector<8x256xf32>
      %29 = vector.extract_strided_slice %28 {offsets = [0, 0], sizes = [8, 128], strides = [1, 1]} : vector<8x256xf32> to vector<8x128xf32>
      %30 = arith.addf %29, %13 : vector<8x128xf32>
      %31 = vector.extract_strided_slice %28 {offsets = [0, 128], sizes = [8, 128], strides = [1, 1]} : vector<8x256xf32> to vector<8x128xf32>
      %32 = arith.addf %31, %13 : vector<8x128xf32>
      %33 = arith.mulf %30, %30 : vector<8x128xf32>
      %cst_18 = arith.constant dense<0.000000e+00> : vector<8xf32>
      %34 = vector.multi_reduction <add>, %33, %cst_18 [1] : vector<8x128xf32> to vector<8xf32>
      %35 = vector.shape_cast %34 : vector<8xf32> to vector<8x1xf32>
      %36 = math.rsqrt %35 : vector<8x1xf32>
      %37 = vector.broadcast %36 : vector<8x1xf32> to vector<8x128xf32>
      %38 = arith.mulf %30, %37 : vector<8x128xf32>
      %39 = arith.mulf %32, %32 : vector<8x128xf32>
      %cst_19 = arith.constant dense<0.000000e+00> : vector<8xf32>
      %40 = vector.multi_reduction <add>, %39, %cst_19 [1] : vector<8x128xf32> to vector<8xf32>
      %41 = vector.shape_cast %40 : vector<8xf32> to vector<8x1xf32>
      %42 = math.rsqrt %41 : vector<8x1xf32>
      %43 = vector.broadcast %42 : vector<8x1xf32> to vector<8x128xf32>
      %44 = arith.mulf %32, %43 : vector<8x128xf32>
      %c0_20 = arith.constant 0 : index
      %c0_21 = arith.constant 0 : index
      %45 = vector.load %arg5[%c0_20, %c0_21] : memref<8x128xf32, #tpu.memory_space<vmem>>, vector<8x128xf32>
      tpu.vector_store %arg5[%c0_20, %c0_21], %38 {strides = array<i32>} : memref<8x128xf32, #tpu.memory_space<vmem>>, vector<8x128xf32>,
      %c0_22 = arith.constant 0 : index
      %c0_23 = arith.constant 0 : index
      %46 = vector.load %arg6[%c0_22, %c0_23] : memref<8x128xf32, #tpu.memory_space<vmem>>, vector<8x128xf32>
      tpu.vector_store %arg6[%c0_22, %c0_23], %44 {strides = array<i32>} : memref<8x128xf32, #tpu.memory_space<vmem>>, vector<8x128xf32>,
    } else {
    }
    return
  }
  func.func @transform_0(%arg0: i32, %arg1: i32) -> (i32, i32, i32) {
    %c0_i32 = arith.constant 0 : i32
    %c0_i32_0 = arith.constant 0 : i32
    return %arg0, %arg1, %c0_i32 : i32, i32, i32
  }
  func.func @transform_1(%arg0: i32, %arg1: i32) -> (i32, i32) {
    %c0_i32 = arith.constant 0 : i32
    %c0_i32_0 = arith.constant 0 : i32
    %c0_i32_1 = arith.constant 0 : i32
    return %c0_i32, %c0_i32_0 : i32, i32
  }
  func.func @transform_2(%arg0: i32, %arg1: i32) -> (i32, i32) {
    %c0_i32 = arith.constant 0 : i32
    %c0_i32_0 = arith.constant 0 : i32
    %c0_i32_1 = arith.constant 0 : i32
    return %c0_i32, %c0_i32_0 : i32, i32
  }
  func.func @transform_3(%arg0: i32, %arg1: i32) -> (i32, i32) {
    %c0_i32 = arith.constant 0 : i32
    %c0_i32_0 = arith.constant 0 : i32
    return %arg0, %c0_i32 : i32, i32
  }
  func.func @transform_4(%arg0: i32, %arg1: i32) -> (i32, i32) {
    %c0_i32 = arith.constant 0 : i32
    %c0_i32_0 = arith.constant 0 : i32
    return %arg0, %c0_i32 : i32, i32
  }
}

module attributes {stable_mosaic.version = 11 : i64} {
  func.func @_embed_kernel(%arg0: i32, %arg1: i32, %arg2: memref<8x64x128xf32, #tpu.memory_space<vmem>>, %arg3: memref<128x256xf32, #tpu.memory_space<vmem>>, %arg4: memref<1x256xf32, #tpu.memory_space<vmem>>, %arg5: memref<8x128xf32, #tpu.memory_space<vmem>>, %arg6: memref<8x128xf32, #tpu.memory_space<vmem>>, %arg7: memref<8x128xf32, #tpu.memory_space<vmem>>) attributes {dimension_semantics = [#tpu.dimension_semantics<parallel>, #tpu.dimension_semantics<arbitrary>], iteration_bounds = array<i64: 2, 4>, scalar_prefetch = 0 : i64, scratch_operands = 1 : i64, tpu.core_type = #tpu.core_type<tc>, window_params = [{transform_indices = @transform_0, window_bounds = array<i64: 8, 64, 128>}, {pipeline_mode = #tpu.pipeline_mode<synchronous>, transform_indices = @transform_1, window_bounds = array<i64: 128, 256>}, {pipeline_mode = #tpu.pipeline_mode<synchronous>, transform_indices = @transform_2, window_bounds = array<i64: 1, 256>}, {transform_indices = @transform_3, window_bounds = array<i64: 8, 128>}, {transform_indices = @transform_4, window_bounds = array<i64: 8, 128>}]} {
    %c0_i32 = arith.constant 0 : i32
    %0 = arith.cmpi eq, %arg1, %c0_i32 : i32
    %1 = arith.extui %0 : i1 to i32
    %c0_i32_0 = arith.constant 0 : i32
    %2 = arith.cmpi ne, %1, %c0_i32_0 : i32
    scf.if %2 {
      %cst_8 = arith.constant 0.000000e+00 : f32
      %11 = vector.broadcast %cst_8 : f32 to vector<8x128xf32>
      %c0_9 = arith.constant 0 : index
      %c0_10 = arith.constant 0 : index
      %12 = vector.load %arg7[%c0_9, %c0_10] : memref<8x128xf32, #tpu.memory_space<vmem>>, vector<8x128xf32>
      tpu.vector_store %arg7[%c0_9, %c0_10], %11 {strides = array<i32>} : memref<8x128xf32, #tpu.memory_space<vmem>>, vector<8x128xf32>,
    } else {
    }
    %c0 = arith.constant 0 : index
    %c0_1 = arith.constant 0 : index
    %3 = vector.load %arg7[%c0, %c0_1] : memref<8x128xf32, #tpu.memory_space<vmem>>, vector<8x128xf32>
    %c0_2 = arith.constant 0 : index
    %c0_3 = arith.constant 0 : index
    %c0_4 = arith.constant 0 : index
    %4 = vector.load %arg2[%c0_2, %c0_3, %c0_4] : memref<8x64x128xf32, #tpu.memory_space<vmem>>, vector<8x64x128xf32>
    %cst = arith.constant dense<0.000000e+00> : vector<8x128xf32>
    %5 = vector.multi_reduction <add>, %4, %cst [1] : vector<8x64x128xf32> to vector<8x128xf32>
    %6 = arith.addf %3, %5 : vector<8x128xf32>
    %c0_5 = arith.constant 0 : index
    %c0_6 = arith.constant 0 : index
    %7 = vector.load %arg7[%c0_5, %c0_6] : memref<8x128xf32, #tpu.memory_space<vmem>>, vector<8x128xf32>
    tpu.vector_store %arg7[%c0_5, %c0_6], %6 {strides = array<i32>} : memref<8x128xf32, #tpu.memory_space<vmem>>, vector<8x128xf32>,
    %c3_i32 = arith.constant 3 : i32
    %8 = arith.cmpi eq, %arg1, %c3_i32 : i32
    %9 = arith.extui %8 : i1 to i32
    %c0_i32_7 = arith.constant 0 : i32
    %10 = arith.cmpi ne, %9, %c0_i32_7 : i32
    scf.if %10 {
      %c0_8 = arith.constant 0 : index
      %c0_9 = arith.constant 0 : index
      %11 = vector.load %arg7[%c0_8, %c0_9] : memref<8x128xf32, #tpu.memory_space<vmem>>, vector<8x128xf32>
      %cst_10 = arith.constant 3.906250e-03 : f32
      %12 = vector.broadcast %cst_10 : f32 to vector<8x128xf32>
      %13 = arith.mulf %11, %12 : vector<8x128xf32>
      %c0_11 = arith.constant 0 : index
      %c0_12 = arith.constant 0 : index
      %14 = vector.load %arg3[%c0_11, %c0_12] : memref<128x256xf32, #tpu.memory_space<vmem>>, vector<128x256xf32>
      %cst_13 = arith.constant dense<0.000000e+00> : vector<8x256xf32>
      %15 = tpu.matmul %13, %14, %cst_13 {dimension_numbers = #tpu.dot_dimension_numbers<[1], [0], [0], [1], [0, 0, 1, 1], [], []>} : vector<8x128xf32>, vector<128x256xf32>, vector<8x256xf32> -> vector<8x256xf32>
      %c0_14 = arith.constant 0 : index
      %c0_15 = arith.constant 0 : index
      %16 = vector.load %arg4[%c0_14, %c0_15] : memref<1x256xf32, #tpu.memory_space<vmem>>, vector<1x256xf32>
      %17 = vector.broadcast %16 : vector<1x256xf32> to vector<8x256xf32>
      %18 = arith.addf %15, %17 : vector<8x256xf32>
      %19 = math.absf %18 : vector<8x256xf32>
      %cst_16 = arith.constant 0.000000e+00 : f32
      %20 = vector.broadcast %cst_16 : f32 to vector<8x256xf32>
      %21 = arith.subf %20, %19 : vector<8x256xf32>
      %22 = math.exp %21 : vector<8x256xf32>
      %23 = math.log1p %22 : vector<8x256xf32>
      %cst_17 = arith.constant 0.000000e+00 : f32
      %24 = vector.broadcast %cst_17 : f32 to vector<8x256xf32>
      %25 = arith.maximumf %18, %24 : vector<8x256xf32>
      %26 = arith.addf %23, %25 : vector<8x256xf32>
      %27 = math.tanh %26 : vector<8x256xf32>
      %28 = arith.mulf %18, %27 : vector<8x256xf32>
      %29 = vector.extract_strided_slice %28 {offsets = [0, 0], sizes = [8, 128], strides = [1, 1]} : vector<8x256xf32> to vector<8x128xf32>
      %30 = arith.addf %29, %13 : vector<8x128xf32>
      %31 = vector.extract_strided_slice %28 {offsets = [0, 128], sizes = [8, 128], strides = [1, 1]} : vector<8x256xf32> to vector<8x128xf32>
      %32 = arith.addf %31, %13 : vector<8x128xf32>
      %33 = arith.mulf %30, %30 : vector<8x128xf32>
      %cst_18 = arith.constant dense<0.000000e+00> : vector<8xf32>
      %34 = vector.multi_reduction <add>, %33, %cst_18 [1] : vector<8x128xf32> to vector<8xf32>
      %35 = vector.shape_cast %34 : vector<8xf32> to vector<8x1xf32>
      %36 = math.rsqrt %35 : vector<8x1xf32>
      %37 = vector.broadcast %36 : vector<8x1xf32> to vector<8x128xf32>
      %38 = arith.mulf %30, %37 : vector<8x128xf32>
      %39 = arith.mulf %32, %32 : vector<8x128xf32>
      %cst_19 = arith.constant dense<0.000000e+00> : vector<8xf32>
      %40 = vector.multi_reduction <add>, %39, %cst_19 [1] : vector<8x128xf32> to vector<8xf32>
      %41 = vector.shape_cast %40 : vector<8xf32> to vector<8x1xf32>
      %42 = math.rsqrt %41 : vector<8x1xf32>
      %43 = vector.broadcast %42 : vector<8x1xf32> to vector<8x128xf32>
      %44 = arith.mulf %32, %43 : vector<8x128xf32>
      %c0_20 = arith.constant 0 : index
      %c0_21 = arith.constant 0 : index
      %45 = vector.load %arg5[%c0_20, %c0_21] : memref<8x128xf32, #tpu.memory_space<vmem>>, vector<8x128xf32>
      tpu.vector_store %arg5[%c0_20, %c0_21], %38 {strides = array<i32>} : memref<8x128xf32, #tpu.memory_space<vmem>>, vector<8x128xf32>,
      %c0_22 = arith.constant 0 : index
      %c0_23 = arith.constant 0 : index
      %46 = vector.load %arg6[%c0_22, %c0_23] : memref<8x128xf32, #tpu.memory_space<vmem>>, vector<8x128xf32>
      tpu.vector_store %arg6[%c0_22, %c0_23], %44 {strides = array<i32>} : memref<8x128xf32, #tpu.memory_space<vmem>>, vector<8x128xf32>,
    } else {
    }
    return
  }
  func.func @transform_0(%arg0: i32, %arg1: i32) -> (i32, i32, i32) {
    %c0_i32 = arith.constant 0 : i32
    %c0_i32_0 = arith.constant 0 : i32
    return %arg0, %arg1, %c0_i32 : i32, i32, i32
  }
  func.func @transform_1(%arg0: i32, %arg1: i32) -> (i32, i32) {
    %c0_i32 = arith.constant 0 : i32
    %c0_i32_0 = arith.constant 0 : i32
    %c0_i32_1 = arith.constant 0 : i32
    return %c0_i32, %c0_i32_0 : i32, i32
  }
  func.func @transform_2(%arg0: i32, %arg1: i32) -> (i32, i32) {
    %c0_i32 = arith.constant 0 : i32
    %c0_i32_0 = arith.constant 0 : i32
    %c0_i32_1 = arith.constant 0 : i32
    return %c0_i32, %c0_i32_0 : i32, i32
  }
  func.func @transform_3(%arg0: i32, %arg1: i32) -> (i32, i32) {
    %c0_i32 = arith.constant 0 : i32
    %c0_i32_0 = arith.constant 0 : i32
    return %arg0, %c0_i32 : i32, i32
  }
  func.func @transform_4(%arg0: i32, %arg1: i32) -> (i32, i32) {
    %c0_i32 = arith.constant 0 : i32
    %c0_i32_0 = arith.constant 0 : i32
    return %arg0, %c0_i32 : i32, i32
  }
}

</mosaic_0001>

<llo_original>
// kernel: tpu_custom_call.1
$region0: #{tpu_custom_call.1}
  #allocation0 [shape = 'u32[]', space=smem, size = 0x4, offset = 0x4, fixed_abs, tag = 'smem constant byte address 0x4 - core index']
  #allocation1 [shape = 'u32[144,128]{1,0:T(1,128)}', space=vmem, size = 0x12000, scoped, tag = 'internal scratch']
  #allocation2 [shape = 'f32[8,128]{1,0:T(8,128)}', space=vmem, size = 0x1000, scoped, tag = 'scratch operand']
  #allocation12 [shape = 's32[]', space=sflag, size = 0x4, offset = 0, fixed_abs, tag = 'sflag constant byte address 0x0 - dummy sync flag']
  %s0 = inlined_call_operand.hbm [shape: f32[16,256,128], index: 0, kind: input, shape index: {}]
  %s1 = inlined_call_operand.hbm [shape: f32[128,256], index: 1, kind: input, shape index: {}]
  %s2 = inlined_call_operand.hbm [shape: f32[1,256], index: 2, kind: input, shape index: {}]
  %s3 = inlined_call_operand.hbm [shape: f32[16,128], index: 3, kind: output, shape index: {0}]
  %s4 = inlined_call_operand.hbm [shape: f32[16,128], index: 4, kind: output, shape index: {1}]
  %5 = xla_tuple %s3, %s4
  %s6 = sld [smem:[#allocation0]]
  $region73: #{tpu_custom_call.1} parent=0
    _
  %s8 = ssub.s32 1, %s6
  %s9 = scalar_select 0, %s8, %s6
  $region1: #{tpu_custom_call.1} parent=0
    #allocation3 [shape = 'u8[524288]{0}', space=vmem, size = 0x80000, scoped, tag = 'input window, operand 0']
    #allocation4 [shape = 's32[2]{0}', space=sflag, size = 0x8, scoped, tag = 'scoped memory for tpu_custom_call.1']
    #allocation5 [shape = 's32[2]{0}', space=sflag, size = 0x8, scoped, tag = 'scoped memory for tpu_custom_call.1']
    #allocation6 [shape = 'u8[131072]{0}', space=vmem, size = 0x20000, scoped, tag = 'input window, operand 1, single buffered']
    #allocation7 [shape = 's32[1]{0}', space=sflag, size = 0x4, scoped, tag = 'scoped memory for tpu_custom_call.1']
    #allocation8 [shape = 'u8[1024]{0}', space=vmem, size = 0x400, scoped, tag = 'input window, operand 2, single buffered']
    #allocation9 [shape = 'u8[8192]{0}', space=vmem, size = 0x2000, scoped, tag = 'output window, operand 0']
    #allocation10 [shape = 'u8[8192]{0}', space=vmem, size = 0x2000, scoped, tag = 'output window, operand 1']
    #allocation11 [shape = 's32[2]{0}', space=sflag, size = 0x8, scoped, tag = 'scoped memory for tpu_custom_call.1']
    %10 = vsyncpa [#allocation4], 0
    %s11 = scalar_lea.sflag [#allocation4], 1
    %12 = vsyncpa %s11, 0
    %13 = vsyncpa [#allocation7], 0
    %14 = vsyncpa [#allocation5], 0
    %s15 = scalar_lea.sflag [#allocation5], 1
    %16 = vsyncpa %s15, 0
    %17 = vsyncpa [#allocation11], 0
    %s18 = scalar_lea.sflag [#allocation11], 1
    %19 = vsyncpa %s18, 0
    loop: start=0, step=1, limit=10
    $region2: #{tpu_custom_call.1} parent=1 // loop_pre_header
      _
    $region3: #{tpu_custom_call.1} parent=1 // loop_header
      %s21 = sphi 0, %s25
      %p22 = scmp.ge.s32.totalorder %s21, 10
      %s28 = sphi 0, %s40
      %s29 = sphi 0, %s36
      %s30 = sphi 0, %s28
      %s31 = sphi 0, %s29
      %s32 = sphi 0, %s30
      %s33 = sphi 0, %s31
      %s45 = sphi 0, %s47
      %s48 = sphi 0, %s45
      %s49 = sphi 0, %s48
      %s65 = sphi 0, %s49
      %s69 = sphi 0, %s69
      %s71 = sphi 0, %s69
      %s72 = sphi 0, %s71
      %s86 = sphi 0, %s72
      %s90 = sphi 0, %s90
      %s92 = sphi 0, %s90
      %s93 = sphi 0, %s92
      %s107 = sphi 0, %s93
      %s113 = sphi 0, %s115
      %s116 = sphi 0, %s113
      %s117 = sphi 0, %s116
      %s133 = sphi 0, %s117
      %s139 = sphi 0, %s141
      %s142 = sphi 0, %s139
      %s143 = sphi 0, %s142
      %s159 = sphi 0, %s143
    $region4: #{tpu_custom_call.1} parent=1 // loop_header_branch
      %24 = sbr.rel (%p22) target = $region8
    $region5: #{tpu_custom_call.1} parent=1 // loop_body
      %s26 = ssub.s32 %s21, 1
      %s27 = ssub.s32 %s21, 2
      %s34 = sadd.s32 1, %s29
      %p35 = scmp.ge.s32.totalorder %s34, 4
      %s36 = scalar_select %p35, 0, %s34
      %s37 = sadd.s32 1, %s28
      %s38 = scalar_select %p35, %s37, %s28
      %p39 = scmp.ge.s32.totalorder %s38, 2
      %s40 = scalar_select %p39, 0, %s38
      %s41 = ssub.s32 %s28, %s40
      %s42 = ssub.s32 %s29, %s36
      %s43 = sor.u32 %s41, %s42
      %p44 = scmp.eq.s32.totalorder %s43, 0
      %s46 = sadd.s32 %s45, 1
      %s47 = scalar_select %p44, %s45, %s46
      %p50 = pneg %p44
      %p51 = scmp.eq.s32.totalorder %s21, 7
      %p52 = por %p50, %p51
      %p53 = scmp.ne.s32.totalorder %s45, %s48
      %p54 = scmp.eq.s32.totalorder %s21, 0
      %p55 = por %p53, %p54
      %p56 = scmp.ne.s32.totalorder %s45, %s48
      %p57 = scmp.eq.s32.totalorder %s26, 7
      %p58 = por %p56, %p57
      %p59 = scmp.ne.s32.totalorder %s48, %s49
      %p60 = scmp.eq.s32.totalorder %s26, 0
      %p61 = por %p59, %p60
      %p62 = scmp.ne.s32.totalorder %s48, %s49
      %p63 = scmp.eq.s32.totalorder %s27, 7
      %p64 = por %p62, %p63
      %p66 = scmp.ne.s32.totalorder %s49, %s65
      %p67 = scmp.eq.s32.totalorder %s27, 0
      %p68 = por %p66, %p67
      %s70 = sadd.s32 %s69, 1
      %p73 = scmp.eq.s32.totalorder %s21, 7
      %p74 = scmp.ne.s32.totalorder %s69, %s71
      %p75 = scmp.eq.s32.totalorder %s21, 0
      %p76 = por %p74, %p75
      %p77 = scmp.ne.s32.totalorder %s69, %s71
      %p78 = scmp.eq.s32.totalorder %s26, 7
      %p79 = por %p77, %p78
      %p80 = scmp.ne.s32.totalorder %s71, %s72
      %p81 = scmp.eq.s32.totalorder %s26, 0
      %p82 = por %p80, %p81
      %p83 = scmp.ne.s32.totalorder %s71, %s72
      %p84 = scmp.eq.s32.totalorder %s27, 7
      %p85 = por %p83, %p84
      %p87 = scmp.ne.s32.totalorder %s72, %s86
      %p88 = scmp.eq.s32.totalorder %s27, 0
      %p89 = por %p87, %p88
      %s91 = sadd.s32 %s90, 1
      %p94 = scmp.eq.s32.totalorder %s21, 7
      %p95 = scmp.ne.s32.totalorder %s90, %s92
      %p96 = scmp.eq.s32.totalorder %s21, 0
      %p97 = por %p95, %p96
      %p98 = scmp.ne.s32.totalorder %s90, %s92
      %p99 = scmp.eq.s32.totalorder %s26, 7
      %p100 = por %p98, %p99
      %p101 = scmp.ne.s32.totalorder %s92, %s93
      %p102 = scmp.eq.s32.totalorder %s26, 0
      %p103 = por %p101, %p102
      %p104 = scmp.ne.s32.totalorder %s92, %s93
      %p105 = scmp.eq.s32.totalorder %s27, 7
      %p106 = por %p104, %p105
      %p108 = scmp.ne.s32.totalorder %s93, %s107
      %p109 = scmp.eq.s32.totalorder %s27, 0
      %p110 = por %p108, %p109
      %s111 = ssub.s32 %s28, %s40
      %p112 = scmp.eq.s32.totalorder %s111, 0
      %s114 = sadd.s32 %s113, 1
      %s115 = scalar_select %p112, %s113, %s114
      %p118 = pneg %p112
      %p119 = scmp.eq.s32.totalorder %s21, 7
      %p120 = por %p118, %p119
      %p121 = scmp.ne.s32.totalorder %s113, %s116
      %p122 = scmp.eq.s32.totalorder %s21, 0
      %p123 = por %p121, %p122
      %p124 = scmp.ne.s32.totalorder %s113, %s116
      %p125 = scmp.eq.s32.totalorder %s26, 7
      %p126 = por %p124, %p125
      %p127 = scmp.ne.s32.totalorder %s116, %s117
      %p128 = scmp.eq.s32.totalorder %s26, 0
      %p129 = por %p127, %p128
      %p130 = scmp.ne.s32.totalorder %s116, %s117
      %p131 = scmp.eq.s32.totalorder %s27, 7
      %p132 = por %p130, %p131
      %p134 = scmp.ne.s32.totalorder %s117, %s133
      %p135 = scmp.eq.s32.totalorder %s27, 0
      %p136 = por %p134, %p135
      %s137 = ssub.s32 %s28, %s40
      %p138 = scmp.eq.s32.totalorder %s137, 0
      %s140 = sadd.s32 %s139, 1
      %s141 = scalar_select %p138, %s139, %s140
      %p144 = pneg %p138
      %p145 = scmp.eq.s32.totalorder %s21, 7
      %p146 = por %p144, %p145
      %p147 = scmp.ne.s32.totalorder %s139, %s142
      %p148 = scmp.eq.s32.totalorder %s21, 0
      %p149 = por %p147, %p148
      %p150 = scmp.ne.s32.totalorder %s139, %s142
      %p151 = scmp.eq.s32.totalorder %s26, 7
      %p152 = por %p150, %p151
      %p153 = scmp.ne.s32.totalorder %s142, %s143
      %p154 = scmp.eq.s32.totalorder %s26, 0
      %p155 = por %p153, %p154
      %p156 = scmp.ne.s32.totalorder %s142, %s143
      %p157 = scmp.eq.s32.totalorder %s27, 7
      %p158 = por %p156, %p157
      %p160 = scmp.ne.s32.totalorder %s143, %s159
      %p161 = scmp.eq.s32.totalorder %s27, 0
      %p162 = por %p160, %p161
      %p163 = scmp.le.s32.totalorder 1, %s21
      %p164 = scmp.lt.s32.totalorder %s21, 9
      %p165 = pnand %p163, %p164
      %p166 = pneg %p165
      // Predicated region
      $region9: #{tpu_custom_call.1} parent=5 // pred_check
        _
      $region10: #{tpu_custom_call.1} parent=5 // pred_check_branch
        %168 = sbr.rel (%p165) target = $region12
      $region11: #{tpu_custom_call.1} parent=5 // pred_region
        %s169 = ssub.s32 %s21, 1
        // Predicated region
        $region13: #{tpu_custom_call.1} parent=11 // pred_check
          %p170 = pneg %p82
        $region14: #{tpu_custom_call.1} parent=11 // pred_check_branch
          %172 = sbr.rel (%p170) target = $region16
        $region15: #{tpu_custom_call.1} parent=11 // pred_region
          %s174 = ssub.s32 4096, 4096
          %175 = vsyncadd [#allocation7], %s174
          %s176 = sshll.u32 [#allocation6], 4
          %s177 = int_to_ptr.vmem [resolvable:$true] %s176
          %182 = dma.hbm_to_vmem [thread:$0]  %s1, 4096, %s177, [#allocation7], 256, 256, 16
        $region16: #{tpu_custom_call.1} parent=11 // pred_fallthru
          _
        // Predicated region
        $region17: #{tpu_custom_call.1} parent=11 // pred_check
          %p183 = pneg %p103
        $region18: #{tpu_custom_call.1} parent=11 // pred_check_branch
          %185 = sbr.rel (%p183) target = $region20
        $region19: #{tpu_custom_call.1} parent=11 // pred_region
          %s187 = ssub.s32 32, 32
          %188 = vsyncadd [#allocation7], %s187
          %s190 = sshll.u32 [#allocation8], 4
          %s191 = int_to_ptr.vmem [resolvable:$true] %s190
          %193 = dma.hbm_to_vmem [thread:$0]  %s2, 32, %s191, [#allocation7]
        $region20: #{tpu_custom_call.1} parent=11 // pred_fallthru
          _
      $region12: #{tpu_custom_call.1} parent=5 // pred_fallthru
        _
      %p194 = scmp.lt.s32.totalorder %s21, 8
      // Predicated region
      $region21: #{tpu_custom_call.1} parent=5 // pred_check
        %p195 = pneg %p194
      $region22: #{tpu_custom_call.1} parent=5 // pred_check_branch
        %197 = sbr.rel (%p195) target = $region24
      $region23: #{tpu_custom_call.1} parent=5 // pred_region
        // Predicated region
        $region25: #{tpu_custom_call.1} parent=23 // pred_check
          %p198 = pneg %p55
        $region26: #{tpu_custom_call.1} parent=23 // pred_check_branch
          %200 = sbr.rel (%p198) target = $region28
        $region27: #{tpu_custom_call.1} parent=23 // pred_region
          #allocation13 [shape = 'u32[6]{0}', space=smem, size = 0x18, scoped, tag = 'DMA stride descriptor']
          %s201 = sand.u32 %s45, 1
          %s202 = scalar_lea.sflag [#allocation4], %s201
          %s203 = sand.u32 %s45, 1
          %s204 = smul.addr %s203, 512
          %s205 = scalar_lea.vmem [#allocation3], %s204
          %s206 = smul.u32 8, %s28
          %s207 = smul.u32 8, %s29
          %s209 = ssub.s32 8192, 8192
          %210 = vsyncadd %s202, %s209
          %s211 = smul.addr %s206, 32
          %s212 = sadd.s32 %s207, %s211
          %s213 = smul.addr %s212, 128
          %s214 = scalar_lea.hbm %s0, %s213
          %s216 = sshll.u32 1, 14
          %s217 = sxor.u32 4294967295, %s216
          %s219 = sld [smem:[#allocation0]]
          %s220 = sadd.s32 2, %s219
          %s222 = sshll.u32 7, 26
          %s223 = sxor.u32 4294967295, %s222
          %s224 = sand.u32 0, %s223
          %s225 = sshll.u32 %s220, 26
          %s226 = sor.u32 %s224, %s225
          %s227 = sshll.u32 %s205, 4
          %s228 = int_to_ptr.vmem [resolvable:$true] %s227
          %234 = sst [smem:[#allocation13]] 4096
          %s235 = scalar_lea.smem [#allocation13], 1
          %236 = sst [smem:[%s235]] 1024
          %s237 = scalar_lea.smem [#allocation13], 2
          %238 = sst [smem:[%s237]] 8
          %s239 = scalar_lea.smem [#allocation13], 3
          %240 = sst [smem:[%s239]] 128
          %s241 = scalar_lea.smem [#allocation13], 4
          %242 = sst [smem:[%s241]] 128
          %s243 = scalar_lea.smem [#allocation13], 5
          %244 = sst [smem:[%s243]] 8
          %246 = dma.general %s214, 8192, %s228, %s202, [#allocation12], [#allocation13], %s226, 0
        $region28: #{tpu_custom_call.1} parent=23 // pred_fallthru
          _
      $region24: #{tpu_custom_call.1} parent=5 // pred_fallthru
        _
      %p247 = scmp.le.s32.totalorder 1, %s21
      %p248 = scmp.lt.s32.totalorder %s21, 9
      %p249 = pnand %p247, %p248
      %p250 = pneg %p249
      // Predicated region
      $region29: #{tpu_custom_call.1} parent=5 // pred_check
        _
      $region30: #{tpu_custom_call.1} parent=5 // pred_check_branch
        %252 = sbr.rel (%p249) target = $region32
      $region31: #{tpu_custom_call.1} parent=5 // pred_region
        %s253 = ssub.s32 %s21, 1
        %s254 = sand.u32 %s48, 1
        %s255 = scalar_lea.sflag [#allocation4], %s254
        %s256 = sand.u32 %s48, 1
        %s257 = smul.addr %s256, 512
        %s258 = scalar_lea.vmem [#allocation3], %s257
        // Predicated region
        $region33: #{tpu_custom_call.1} parent=31 // pred_check
          %p259 = pneg %p61
        $region34: #{tpu_custom_call.1} parent=31 // pred_check_branch
          %261 = sbr.rel (%p259) target = $region36
        $region35: #{tpu_custom_call.1} parent=31 // pred_region
          %262 = dma.done %s255, 8192
        $region36: #{tpu_custom_call.1} parent=31 // pred_fallthru
          _
        // Predicated region
        $region37: #{tpu_custom_call.1} parent=31 // pred_check
          %p263 = pneg %p82
        $region38: #{tpu_custom_call.1} parent=31 // pred_check_branch
          %265 = sbr.rel (%p263) target = $region40
        $region39: #{tpu_custom_call.1} parent=31 // pred_region
          %266 = dma.done [#allocation7], 4096
        $region40: #{tpu_custom_call.1} parent=31 // pred_fallthru
          _
        // Predicated region
        $region41: #{tpu_custom_call.1} parent=31 // pred_check
          %p267 = pneg %p103
        $region42: #{tpu_custom_call.1} parent=31 // pred_check_branch
          %269 = sbr.rel (%p267) target = $region44
        $region43: #{tpu_custom_call.1} parent=31 // pred_region
          %270 = dma.done [#allocation7], 32
        $region44: #{tpu_custom_call.1} parent=31 // pred_fallthru
          _
        %s271 = sand.u32 %s48, 1
        %s272 = scalar_lea.sflag [#allocation4], %s271
        %s273 = sand.u32 %s48, 1
        %s274 = smul.addr %s273, 512
        %s275 = scalar_lea.vmem [#allocation3], %s274
        %p276 = pneg %p61
        %p277 = pneg %p58
        %p278 = pneg %p82
        %p279 = pneg %p79
        %p280 = pneg %p103
        %p281 = pneg %p100
        %p282 = pneg %p129
        %p283 = pneg %p126
        %s284 = sand.u32 %s116, 1
        %s285 = scalar_lea.sflag [#allocation5], %s284
        %s286 = sand.u32 %s116, 1
        %s287 = smul.addr %s286, 8
        %s288 = scalar_lea.vmem [#allocation9], %s287
        %p289 = pneg %p155
        %p290 = pneg %p152
        %s291 = sand.u32 %s142, 1
        %s292 = scalar_lea.sflag [#allocation11], %s291
        %s293 = sand.u32 %s142, 1
        %s294 = smul.addr %s293, 8
        %s295 = scalar_lea.vmem [#allocation10], %s294
        %s296 = smul.u32 8, %s30
        %s297 = smul.u32 8, %s31
        %p298 = scmp.eq.s32.totalorder %s31, 0
        // Predicated region
        $region45: #{tpu_custom_call.1} parent=31 // pred_check
          %p299 = pneg %p298
        $region46: #{tpu_custom_call.1} parent=31 // pred_check_branch
          %301 = sbr.rel (%p299) target = $region48
        $region47: #{tpu_custom_call.1} parent=31 // pred_region
          %302 = vst [vmem:[#allocation2] sm:$0xff] 0.0
        $region48: #{tpu_custom_call.1} parent=31 // pred_fallthru
          _
        %v303 = vld [vmem:[#allocation2] sm:$0xff]
        %v304 = vld [vmem:[%s258] sm:$0xff]
        %v305 = vld [vmem:[%s258 + $0x8] sm:$0xff]
        %v306 = vld [vmem:[%s258 + $0x10] sm:$0xff]
        %v307 = vld [vmem:[%s258 + $0x18] sm:$0xff]
        %v308 = vld [vmem:[%s258 + $0x20] sm:$0xff]
        %v309 = vld [vmem:[%s258 + $0x28] sm:$0xff]
        %v310 = vld [vmem:[%s258 + $0x30] sm:$0xff]
        %v311 = vld [vmem:[%s258 + $0x38] sm:$0xff]
        %v312 = vld [vmem:[%s258 + $0x40] sm:$0xff]
        %v313 = vld [vmem:[%s258 + $0x48] sm:$0xff]
        %v314 = vld [vmem:[%s258 + $0x50] sm:$0xff]
        %v315 = vld [vmem:[%s258 + $0x58] sm:$0xff]
        %v316 = vld [vmem:[%s258 + $0x60] sm:$0xff]
        %v317 = vld [vmem:[%s258 + $0x68] sm:$0xff]
        %v318 = vld [vmem:[%s258 + $0x70] sm:$0xff]
        %v319 = vld [vmem:[%s258 + $0x78] sm:$0xff]
        %v320 = vld [vmem:[%s258 + $0x80] sm:$0xff]
        %v321 = vld [vmem:[%s258 + $0x88] sm:$0xff]
        %v322 = vld [vmem:[%s258 + $0x90] sm:$0xff]
        %v323 = vld [vmem:[%s258 + $0x98] sm:$0xff]
        %v324 = vld [vmem:[%s258 + $0xa0] sm:$0xff]
        %v325 = vld [vmem:[%s258 + $0xa8] sm:$0xff]
        %v326 = vld [vmem:[%s258 + $0xb0] sm:$0xff]
        %v327 = vld [vmem:[%s258 + $0xb8] sm:$0xff]
        %v328 = vld [vmem:[%s258 + $0xc0] sm:$0xff]
        %v329 = vld [vmem:[%s258 + $0xc8] sm:$0xff]
        %v330 = vld [vmem:[%s258 + $0xd0] sm:$0xff]
        %v331 = vld [vmem:[%s258 + $0xd8] sm:$0xff]
        %v332 = vld [vmem:[%s258 + $0xe0] sm:$0xff]
        %v333 = vld [vmem:[%s258 + $0xe8] sm:$0xff]
        %v334 = vld [vmem:[%s258 + $0xf0] sm:$0xff]
        %v335 = vld [vmem:[%s258 + $0xf8] sm:$0xff]
        %v336 = vld [vmem:[%s258 + $0x100] sm:$0xff]
        %v337 = vld [vmem:[%s258 + $0x108] sm:$0xff]
        %v338 = vld [vmem:[%s258 + $0x110] sm:$0xff]
        %v339 = vld [vmem:[%s258 + $0x118] sm:$0xff]
        %v340 = vld [vmem:[%s258 + $0x120] sm:$0xff]
        %v341 = vld [vmem:[%s258 + $0x128] sm:$0xff]
        %v342 = vld [vmem:[%s258 + $0x130] sm:$0xff]
        %v343 = vld [vmem:[%s258 + $0x138] sm:$0xff]
        %v344 = vld [vmem:[%s258 + $0x140] sm:$0xff]
        %v345 = vld [vmem:[%s258 + $0x148] sm:$0xff]
        %v346 = vld [vmem:[%s258 + $0x150] sm:$0xff]
        %v347 = vld [vmem:[%s258 + $0x158] sm:$0xff]
        %v348 = vld [vmem:[%s258 + $0x160] sm:$0xff]
        %v349 = vld [vmem:[%s258 + $0x168] sm:$0xff]
        %v350 = vld [vmem:[%s258 + $0x170] sm:$0xff]
        %v351 = vld [vmem:[%s258 + $0x178] sm:$0xff]
        %v352 = vld [vmem:[%s258 + $0x180] sm:$0xff]
        %v353 = vld [vmem:[%s258 + $0x188] sm:$0xff]
        %v354 = vld [vmem:[%s258 + $0x190] sm:$0xff]
        %v355 = vld [vmem:[%s258 + $0x198] sm:$0xff]
        %v356 = vld [vmem:[%s258 + $0x1a0] sm:$0xff]
        %v357 = vld [vmem:[%s258 + $0x1a8] sm:$0xff]
        %v358 = vld [vmem:[%s258 + $0x1b0] sm:$0xff]
        %v359 = vld [vmem:[%s258 + $0x1b8] sm:$0xff]
        %v360 = vld [vmem:[%s258 + $0x1c0] sm:$0xff]
        %v361 = vld [vmem:[%s258 + $0x1c8] sm:$0xff]
        %v362 = vld [vmem:[%s258 + $0x1d0] sm:$0xff]
        %v363 = vld [vmem:[%s258 + $0x1d8] sm:$0xff]
        %v364 = vld [vmem:[%s258 + $0x1e0] sm:$0xff]
        %v365 = vld [vmem:[%s258 + $0x1e8] sm:$0xff]
        %v366 = vld [vmem:[%s258 + $0x1f0] sm:$0xff]
        %v367 = vld [vmem:[%s258 + $0x1f8] sm:$0xff]
        %v368 = vadd.f32 %v304, %v305
        %v369 = vadd.f32 %v368, %v306
        %v370 = vadd.f32 %v369, %v307
        %v371 = vadd.f32 %v370, %v308
        %v372 = vadd.f32 %v371, %v309
        %v373 = vadd.f32 %v372, %v310
        %v374 = vadd.f32 %v373, %v311
        %v375 = vrot.slane %v374, 4
        %v376 = vadd.f32 %v374, %v375
        %v377 = vrot.slane %v376, 2
        %v378 = vadd.f32 %v376, %v377
        %v379 = vrot.slane %v378, 1
        %v380 = vadd.f32 %v378, %v379
        %v381 = vadd.f32 %v312, %v313
        %v382 = vadd.f32 %v381, %v314
        %v383 = vadd.f32 %v382, %v315
        %v384 = vadd.f32 %v383, %v316
        %v385 = vadd.f32 %v384, %v317
        %v386 = vadd.f32 %v385, %v318
        %v387 = vadd.f32 %v386, %v319
        %v388 = vrot.slane %v387, 4
        %v389 = vadd.f32 %v387, %v388
        %v390 = vrot.slane %v389, 2
        %v391 = vadd.f32 %v389, %v390
        %v392 = vrot.slane %v391, 1
        %v393 = vadd.f32 %v391, %v392
        %v394 = vadd.f32 %v320, %v321
        %v395 = vadd.f32 %v394, %v322
        %v396 = vadd.f32 %v395, %v323
        %v397 = vadd.f32 %v396, %v324
        %v398 = vadd.f32 %v397, %v325
        %v399 = vadd.f32 %v398, %v326
        %v400 = vadd.f32 %v399, %v327
        %v401 = vrot.slane %v400, 4
        %v402 = vadd.f32 %v400, %v401
        %v403 = vrot.slane %v402, 2
        %v404 = vadd.f32 %v402, %v403
        %v405 = vrot.slane %v404, 1
        %v406 = vadd.f32 %v404, %v405
        %v407 = vadd.f32 %v328, %v329
        %v408 = vadd.f32 %v407, %v330
        %v409 = vadd.f32 %v408, %v331
        %v410 = vadd.f32 %v409, %v332
        %v411 = vadd.f32 %v410, %v333
        %v412 = vadd.f32 %v411, %v334
        %v413 = vadd.f32 %v412, %v335
        %v414 = vrot.slane %v413, 4
        %v415 = vadd.f32 %v413, %v414
        %v416 = vrot.slane %v415, 2
        %v417 = vadd.f32 %v415, %v416
        %v418 = vrot.slane %v417, 1
        %v419 = vadd.f32 %v417, %v418
        %v420 = vadd.f32 %v336, %v337
        %v421 = vadd.f32 %v420, %v338
        %v422 = vadd.f32 %v421, %v339
        %v423 = vadd.f32 %v422, %v340
        %v424 = vadd.f32 %v423, %v341
        %v425 = vadd.f32 %v424, %v342
        %v426 = vadd.f32 %v425, %v343
        %v427 = vrot.slane %v426, 4
        %v428 = vadd.f32 %v426, %v427
        %v429 = vrot.slane %v428, 2
        %v430 = vadd.f32 %v428, %v429
        %v431 = vrot.slane %v430, 1
        %v432 = vadd.f32 %v430, %v431
        %v433 = vadd.f32 %v344, %v345
        %v434 = vadd.f32 %v433, %v346
        %v435 = vadd.f32 %v434, %v347
        %v436 = vadd.f32 %v435, %v348
        %v437 = vadd.f32 %v436, %v349
        %v438 = vadd.f32 %v437, %v350
        %v439 = vadd.f32 %v438, %v351
        %v440 = vrot.slane %v439, 4
        %v441 = vadd.f32 %v439, %v440
        %v442 = vrot.slane %v441, 2
        %v443 = vadd.f32 %v441, %v442
        %v444 = vrot.slane %v443, 1
        %v445 = vadd.f32 %v443, %v444
        %v446 = vadd.f32 %v352, %v353
        %v447 = vadd.f32 %v446, %v354
        %v448 = vadd.f32 %v447, %v355
        %v449 = vadd.f32 %v448, %v356
        %v450 = vadd.f32 %v449, %v357
        %v451 = vadd.f32 %v450, %v358
        %v452 = vadd.f32 %v451, %v359
        %v453 = vrot.slane %v452, 4
        %v454 = vadd.f32 %v452, %v453
        %v455 = vrot.slane %v454, 2
        %v456 = vadd.f32 %v454, %v455
        %v457 = vrot.slane %v456, 1
        %v458 = vadd.f32 %v456, %v457
        %v459 = vadd.f32 %v360, %v361
        %v460 = vadd.f32 %v459, %v362
        %v461 = vadd.f32 %v460, %v363
        %v462 = vadd.f32 %v461, %v364
        %v463 = vadd.f32 %v462, %v365
        %v464 = vadd.f32 %v463, %v366
        %v465 = vadd.f32 %v464, %v367
        %v466 = vrot.slane %v465, 4
        %v467 = vadd.f32 %v465, %v466
        %v468 = vrot.slane %v467, 2
        %v469 = vadd.f32 %v467, %v468
        %v470 = vrot.slane %v469, 1
        %v471 = vadd.f32 %v469, %v470
        %vm480 = vcmask 1041409
        %v481 = vsel %vm480, %v393, %v380
        %vm482 = vcmask 1042434
        %v483 = vsel %vm482, %v406, %v481
        %vm484 = vcmask 1043459
        %v485 = vsel %vm484, %v419, %v483
        %vm486 = vcmask 1044484
        %v487 = vsel %vm486, %v432, %v485
        %vm488 = vcmask 1045509
        %v489 = vsel %vm488, %v445, %v487
        %vm490 = vcmask 1046534
        %v491 = vsel %vm490, %v458, %v489
        %vm492 = vcmask 1047559
        %v493 = vsel %vm492, %v471, %v491
        %v495 = vadd.f32 %v303, %v493
        %496 = vst [vmem:[#allocation2] sm:$0xff] %v495
        %p497 = scmp.eq.s32.totalorder %s31, 3
        // Predicated region
        $region49: #{tpu_custom_call.1} parent=31 // pred_check
          %p498 = pneg %p497
        $region50: #{tpu_custom_call.1} parent=31 // pred_check_branch
          %500 = sbr.rel (%p498) target = $region52
        $region51: #{tpu_custom_call.1} parent=31 // pred_region
          %v501 = vld [vmem:[#allocation2] sm:$0xff]
          %v502 = vmul.f32 %v501, 0.00390625
          %v503 = vld [vmem:[#allocation6] sm:$0xff]
          %v504 = vld [vmem:[#allocation6 + $0x8] sm:$0xff]
          %v505 = vld [vmem:[#allocation6 + $0x10] sm:$0xff]
          %v506 = vld [vmem:[#allocation6 + $0x18] sm:$0xff]
          %v507 = vld [vmem:[#allocation6 + $0x20] sm:$0xff]
          %v508 = vld [vmem:[#allocation6 + $0x28] sm:$0xff]
          %v509 = vld [vmem:[#allocation6 + $0x30] sm:$0xff]
          %v510 = vld [vmem:[#allocation6 + $0x38] sm:$0xff]
          %v511 = vld [vmem:[#allocation6 + $0x40] sm:$0xff]
          %v512 = vld [vmem:[#allocation6 + $0x48] sm:$0xff]
          %v513 = vld [vmem:[#allocation6 + $0x50] sm:$0xff]
          %v514 = vld [vmem:[#allocation6 + $0x58] sm:$0xff]
          %v515 = vld [vmem:[#allocation6 + $0x60] sm:$0xff]
          %v516 = vld [vmem:[#allocation6 + $0x68] sm:$0xff]
          %v517 = vld [vmem:[#allocation6 + $0x70] sm:$0xff]
          %v518 = vld [vmem:[#allocation6 + $0x78] sm:$0xff]
          %v519 = vld [vmem:[#allocation6 + $0x80] sm:$0xff]
          %v520 = vld [vmem:[#allocation6 + $0x88] sm:$0xff]
          %v521 = vld [vmem:[#allocation6 + $0x90] sm:$0xff]
          %v522 = vld [vmem:[#allocation6 + $0x98] sm:$0xff]
          %v523 = vld [vmem:[#allocation6 + $0xa0] sm:$0xff]
          %v524 = vld [vmem:[#allocation6 + $0xa8] sm:$0xff]
          %v525 = vld [vmem:[#allocation6 + $0xb0] sm:$0xff]
          %v526 = vld [vmem:[#allocation6 + $0xb8] sm:$0xff]
          %v527 = vld [vmem:[#allocation6 + $0xc0] sm:$0xff]
          %v528 = vld [vmem:[#allocation6 + $0xc8] sm:$0xff]
          %v529 = vld [vmem:[#allocation6 + $0xd0] sm:$0xff]
          %v530 = vld [vmem:[#allocation6 + $0xd8] sm:$0xff]
          %v531 = vld [vmem:[#allocation6 + $0xe0] sm:$0xff]
          %v532 = vld [vmem:[#allocation6 + $0xe8] sm:$0xff]
          %v533 = vld [vmem:[#allocation6 + $0xf0] sm:$0xff]
          %v534 = vld [vmem:[#allocation6 + $0xf8] sm:$0xff]
          %v535 = vld [vmem:[#allocation8] sm:$0x3]
          %v537 = vlaneseq
          %v538 = vshrl.u32 %v537, 7
          %v539 = vsub.s32 0, %v538
          %v540 = vrot.slane %v535, %v539
          %v541 = vlaneseq
          %v542 = vshrl.u32 %v541, 7
          %v543 = vsub.s32 1, %v542
          %v544 = vrot.slane %v535, %v543
          %547 = vmatprep.subr.mxu0 %v504
          %548 = vmatpush1.msra.mxu0 %v503
          %549 = vmatprep.subr.mxu0 %v506
          %550 = vmatpush1.msra.mxu0 %v505
          %551 = vmatprep.subr.mxu0 %v508
          %552 = vmatpush1.msra.mxu0 %v507
          %553 = vmatprep.subr.mxu0 %v510
          %554 = vmatpush1.msra.mxu0 %v509
          %555 = vmatprep.subr.mxu0 %v512
          %556 = vmatpush1.msra.mxu0 %v511
          %557 = vmatprep.subr.mxu0 %v514
          %558 = vmatpush1.msra.mxu0 %v513
          %559 = vmatprep.subr.mxu0 %v516
          %560 = vmatpush1.msra.mxu0 %v515
          %561 = vmatprep.subr.mxu0 %v518
          %562 = vmatpush1.msra.mxu0 %v517
          %563 = vmatprep.subr.mxu0 %v520
          %564 = vmatpush1.msra.mxu0 %v519
          %565 = vmatprep.subr.mxu0 %v522
          %566 = vmatpush1.msra.mxu0 %v521
          %567 = vmatprep.subr.mxu0 %v524
          %568 = vmatpush1.msra.mxu0 %v523
          %569 = vmatprep.subr.mxu0 %v526
          %570 = vmatpush1.msra.mxu0 %v525
          %571 = vmatprep.subr.mxu0 %v528
          %572 = vmatpush1.msra.mxu0 %v527
          %573 = vmatprep.subr.mxu0 %v530
          %574 = vmatpush1.msra.mxu0 %v529
          %575 = vmatprep.subr.mxu0 %v532
          %576 = vmatpush1.msra.mxu0 %v531
          %577 = vmatprep.subr.mxu0 %v534
          %578 = vmatpush1.msra.mxu0 %v533
          %579 = vmatprep.subr.mxu0 0.0
          %580 = vmatpush1.msra.mxu0 0.0
          %581 = vmatprep.subr.mxu0 0.0
          %582 = vmatpush1.msra.mxu0 0.0
          %583 = vmatprep.subr.mxu0 0.0
          %584 = vmatpush1.msra.mxu0 0.0
          %585 = vmatprep.subr.mxu0 0.0
          %586 = vmatpush1.msra.mxu0 0.0
          %587 = vmatprep.subr.mxu0 0.0
          %588 = vmatpush1.msra.mxu0 0.0
          %589 = vmatprep.subr.mxu0 0.0
          %590 = vmatpush1.msra.mxu0 0.0
          %591 = vmatprep.subr.mxu0 0.0
          %592 = vmatpush1.msra.mxu0 0.0
          %593 = vmatprep.subr.mxu0 0.0
          %594 = vmatpush1.msra.mxu0 0.0
          %595 = vmatprep.subr.mxu0 0.0
          %596 = vmatpush1.msra.mxu0 0.0
          %597 = vmatprep.subr.mxu0 0.0
          %598 = vmatpush1.msra.mxu0 0.0
          %599 = vmatprep.subr.mxu0 0.0
          %600 = vmatpush1.msra.mxu0 0.0
          %601 = vmatprep.subr.mxu0 0.0
          %602 = vmatpush1.msra.mxu0 0.0
          %603 = vmatprep.subr.mxu0 0.0
          %604 = vmatpush1.msra.mxu0 0.0
          %605 = vmatprep.subr.mxu0 0.0
          %606 = vmatpush1.msra.mxu0 0.0
          %607 = vmatprep.subr.mxu0 0.0
          %608 = vmatpush1.msra.mxu0 0.0
          %609 = vmatprep.subr.mxu0 0.0
          %610 = vmatpush1.msra.mxu0 0.0
          %611 = vmatprep.mubr.f32.mxu0 0.0
          %612 = vmatmul.mubr.f32.gmra.mrb[0].mxu0 %v502
          %v613 = vpop.f32.mrb[0].mxu0
          %v614 = vadd.f32 %v540, %v613
          %v615 = vpop.f32.mrb[0].mxu0
          %v616 = vadd.f32 %v544, %v615
          %617 = vdwg.mxu0
          %v618 = vand.u32 2147483647, %v614
          %v619 = vand.u32 2147483647, %v616
          %v620 = vsub.f32 0.0, %v618
          %v621 = vsub.f32 0.0, %v619
          %v622 = vmul.f32 %v620, 1.442695
          %v623 = vpow.pop %v622
          %v624 = vmul.f32 %v621, 1.442695
          %v625 = vpow.pop %v624
          %v626 = vadd.f32 %v623, 1.0
          %v627 = vlog2.pop %v626
          %v628 = vmul.f32 %v627, 0.6931472
          %v629 = vmul.f32 -0.5, %v623
          %v630 = vadd.f32 %v629, 1.0
          %v631 = vmul.f32 %v630, %v623
          %v632 = vand.u32 2147483647, %v623
          %vm633 = vcmp.lt.f32.partialorder %v632, 0.0004427343
          %v634 = vsel %vm633, %v631, %v628
          %v635 = vadd.f32 %v625, 1.0
          %v636 = vlog2.pop %v635
          %v637 = vmul.f32 %v636, 0.6931472
          %v638 = vmul.f32 -0.5, %v625
          %v639 = vadd.f32 %v638, 1.0
          %v640 = vmul.f32 %v639, %v625
          %v641 = vand.u32 2147483647, %v625
          %vm642 = vcmp.lt.f32.partialorder %v641, 0.0004427343
          %v643 = vsel %vm642, %v640, %v637
          %v644 = vmax.f32 %v614, 0.0
          %v645 = vmax.f32 %v616, 0.0
          %v646 = vadd.f32 %v634, %v644
          %v647 = vadd.f32 %v643, %v645
          %v648 = vtanh.pop %v646
          %v649 = vtanh.pop %v647
          %v650 = vmul.f32 %v614, %v648
          %v651 = vmul.f32 %v616, %v649
          %v652 = vadd.f32 %v650, %v502
          %v653 = vadd.f32 %v651, %v502
          %v654 = vmul.f32 %v652, %v652
          %655 = vadd.xlane.f32.xlu0 %v654
          %v656 = vpop.xlane.xlu0 %655
          %v657 = vrsqrt.pop %v656
          %v658 = vmul.f32 %v652, %v657
          %v659 = vmul.f32 %v653, %v653
          %660 = vadd.xlane.f32.xlu0 %v659
          %v661 = vpop.xlane.xlu0 %660
          %v662 = vrsqrt.pop %v661
          %v663 = vmul.f32 %v653, %v662
          %664 = vst [vmem:[%s288] sm:$0xff] %v658
          %665 = vst [vmem:[%s295] sm:$0xff] %v663
        $region52: #{tpu_custom_call.1} parent=31 // pred_fallthru
          _
        %s666 = sand.u32 %s116, 1
        %s667 = scalar_lea.sflag [#allocation5], %s666
        %s668 = sand.u32 %s116, 1
        %s669 = smul.addr %s668, 8
        %s670 = scalar_lea.vmem [#allocation9], %s669
        %s671 = sand.u32 %s142, 1
        %s672 = scalar_lea.sflag [#allocation11], %s671
        %s673 = sand.u32 %s142, 1
        %s674 = smul.addr %s673, 8
        %s675 = scalar_lea.vmem [#allocation10], %s674
        // Predicated region
        $region53: #{tpu_custom_call.1} parent=31 // pred_check
          %p676 = pneg %p126
        $region54: #{tpu_custom_call.1} parent=31 // pred_check_branch
          %678 = sbr.rel (%p676) target = $region56
        $region55: #{tpu_custom_call.1} parent=31 // pred_region
          %s680 = ssub.s32 128, 128
          %681 = vsyncadd %s667, %s680
          %s682 = smul.addr %s30, 128
          %s683 = scalar_lea.hbm %s3, %s682
          %s685 = sshll.u32 %s670, 4
          %s686 = int_to_ptr.vmem [resolvable:$true] %s685
          %688 = dma.vmem_to_hbm [thread:$0]  %s686, 128, %s683, %s667
        $region56: #{tpu_custom_call.1} parent=31 // pred_fallthru
          _
        // Predicated region
        $region57: #{tpu_custom_call.1} parent=31 // pred_check
          %p689 = pneg %p152
        $region58: #{tpu_custom_call.1} parent=31 // pred_check_branch
          %691 = sbr.rel (%p689) target = $region60
        $region59: #{tpu_custom_call.1} parent=31 // pred_region
          %s693 = ssub.s32 128, 128
          %694 = vsyncadd %s672, %s693
          %s695 = smul.addr %s30, 128
          %s696 = scalar_lea.hbm %s4, %s695
          %s698 = sshll.u32 %s675, 4
          %s699 = int_to_ptr.vmem [resolvable:$true] %s698
          %701 = dma.vmem_to_hbm [thread:$0]  %s699, 128, %s696, %s672
        $region60: #{tpu_custom_call.1} parent=31 // pred_fallthru
          _
      $region32: #{tpu_custom_call.1} parent=5 // pred_fallthru
        _
      %p702 = scmp.le.s32.totalorder 2, %s21
      // Predicated region
      $region61: #{tpu_custom_call.1} parent=5 // pred_check
        %p703 = pneg %p702
      $region62: #{tpu_custom_call.1} parent=5 // pred_check_branch
        %705 = sbr.rel (%p703) target = $region64
      $region63: #{tpu_custom_call.1} parent=5 // pred_region
        %s706 = ssub.s32 %s21, 2
        // Predicated region
        $region65: #{tpu_custom_call.1} parent=63 // pred_check
          %p707 = pneg %p132
        $region66: #{tpu_custom_call.1} parent=63 // pred_check_branch
          %709 = sbr.rel (%p707) target = $region68
        $region67: #{tpu_custom_call.1} parent=63 // pred_region
          %s710 = sand.u32 %s117, 1
          %s711 = scalar_lea.sflag [#allocation5], %s710
          %s712 = sand.u32 %s117, 1
          %s713 = smul.addr %s712, 8
          %s714 = scalar_lea.vmem [#allocation9], %s713
          %715 = dma.done %s711, 128
        $region68: #{tpu_custom_call.1} parent=63 // pred_fallthru
          _
        // Predicated region
        $region69: #{tpu_custom_call.1} parent=63 // pred_check
          %p716 = pneg %p158
        $region70: #{tpu_custom_call.1} parent=63 // pred_check_branch
          %718 = sbr.rel (%p716) target = $region72
        $region71: #{tpu_custom_call.1} parent=63 // pred_region
          %s719 = sand.u32 %s143, 1
          %s720 = scalar_lea.sflag [#allocation11], %s719
          %s721 = sand.u32 %s143, 1
          %s722 = smul.addr %s721, 8
          %s723 = scalar_lea.vmem [#allocation10], %s722
          %724 = dma.done %s720, 128
        $region72: #{tpu_custom_call.1} parent=63 // pred_fallthru
          _
      $region64: #{tpu_custom_call.1} parent=5 // pred_fallthru
        _
    $region6: #{tpu_custom_call.1} parent=1 // loop_footer
      %s25 = sadd.s32 1, %s21
    $region7: #{tpu_custom_call.1} parent=1 // loop_footer_branch
      %20 = sbr.rel target = $region3
    $region8: #{tpu_custom_call.1} parent=1 // loop_exit
      _
    %725 = vsyncpa [#allocation4], 1
    %s726 = scalar_lea.sflag [#allocation4], 1
    %727 = vsyncpa %s726, 1
    %728 = vsyncpa [#allocation7], 1
    %729 = vsyncpa [#allocation5], 1
    %s730 = scalar_lea.sflag [#allocation5], 1
    %731 = vsyncpa %s730, 1
    %732 = vsyncpa [#allocation11], 1
    %s733 = scalar_lea.sflag [#allocation11], 1
    %734 = vsyncpa %s733, 1

// kernel: tpu_custom_call.1
$region0: #{tpu_custom_call.1}
  #allocation0 [shape = 'u32[]', space=smem, size = 0x4, offset = 0x4, fixed_abs, tag = 'smem constant byte address 0x4 - core index']
  #allocation1 [shape = 'u32[144,128]{1,0:T(1,128)}', space=vmem, size = 0x12000, scoped, tag = 'internal scratch']
  #allocation2 [shape = 'f32[8,128]{1,0:T(8,128)}', space=vmem, size = 0x1000, scoped, tag = 'scratch operand']
  #allocation12 [shape = 's32[]', space=sflag, size = 0x4, offset = 0, fixed_abs, tag = 'sflag constant byte address 0x0 - dummy sync flag']
  %s0 = inlined_call_operand.hbm [shape: f32[16,256,128], index: 0, kind: input, shape index: {}]
  %s1 = inlined_call_operand.hbm [shape: f32[128,256], index: 1, kind: input, shape index: {}]
  %s2 = inlined_call_operand.hbm [shape: f32[1,256], index: 2, kind: input, shape index: {}]
  %s3 = inlined_call_operand.hbm [shape: f32[16,128], index: 3, kind: output, shape index: {0}]
  %s4 = inlined_call_operand.hbm [shape: f32[16,128], index: 4, kind: output, shape index: {1}]
  %5 = xla_tuple %s3, %s4
  %s6 = sld [smem:[#allocation0]]
  $region73: #{tpu_custom_call.1} parent=0
    _
  %s8 = ssub.s32 1, %s6
  %s9 = scalar_select 0, %s8, %s6
  $region1: #{tpu_custom_call.1} parent=0
    #allocation3 [shape = 'u8[524288]{0}', space=vmem, size = 0x80000, scoped, tag = 'input window, operand 0']
    #allocation4 [shape = 's32[2]{0}', space=sflag, size = 0x8, scoped, tag = 'scoped memory for tpu_custom_call.1']
    #allocation5 [shape = 's32[2]{0}', space=sflag, size = 0x8, scoped, tag = 'scoped memory for tpu_custom_call.1']
    #allocation6 [shape = 'u8[131072]{0}', space=vmem, size = 0x20000, scoped, tag = 'input window, operand 1, single buffered']
    #allocation7 [shape = 's32[1]{0}', space=sflag, size = 0x4, scoped, tag = 'scoped memory for tpu_custom_call.1']
    #allocation8 [shape = 'u8[1024]{0}', space=vmem, size = 0x400, scoped, tag = 'input window, operand 2, single buffered']
    #allocation9 [shape = 'u8[8192]{0}', space=vmem, size = 0x2000, scoped, tag = 'output window, operand 0']
    #allocation10 [shape = 'u8[8192]{0}', space=vmem, size = 0x2000, scoped, tag = 'output window, operand 1']
    #allocation11 [shape = 's32[2]{0}', space=sflag, size = 0x8, scoped, tag = 'scoped memory for tpu_custom_call.1']
    %10 = vsyncpa [#allocation4], 0
    %s11 = scalar_lea.sflag [#allocation4], 1
    %12 = vsyncpa %s11, 0
    %13 = vsyncpa [#allocation7], 0
    %14 = vsyncpa [#allocation5], 0
    %s15 = scalar_lea.sflag [#allocation5], 1
    %16 = vsyncpa %s15, 0
    %17 = vsyncpa [#allocation11], 0
    %s18 = scalar_lea.sflag [#allocation11], 1
    %19 = vsyncpa %s18, 0
    loop: start=0, step=1, limit=10
    $region2: #{tpu_custom_call.1} parent=1 // loop_pre_header
      _
    $region3: #{tpu_custom_call.1} parent=1 // loop_header
      %s21 = sphi 0, %s25
      %p22 = scmp.ge.s32.totalorder %s21, 10
      %s28 = sphi 0, %s40
      %s29 = sphi 0, %s36
      %s30 = sphi 0, %s28
      %s31 = sphi 0, %s29
      %s32 = sphi 0, %s30
      %s33 = sphi 0, %s31
      %s45 = sphi 0, %s47
      %s48 = sphi 0, %s45
      %s49 = sphi 0, %s48
      %s65 = sphi 0, %s49
      %s69 = sphi 0, %s69
      %s71 = sphi 0, %s69
      %s72 = sphi 0, %s71
      %s86 = sphi 0, %s72
      %s90 = sphi 0, %s90
      %s92 = sphi 0, %s90
      %s93 = sphi 0, %s92
      %s107 = sphi 0, %s93
      %s113 = sphi 0, %s115
      %s116 = sphi 0, %s113
      %s117 = sphi 0, %s116
      %s133 = sphi 0, %s117
      %s139 = sphi 0, %s141
      %s142 = sphi 0, %s139
      %s143 = sphi 0, %s142
      %s159 = sphi 0, %s143
    $region4: #{tpu_custom_call.1} parent=1 // loop_header_branch
      %24 = sbr.rel (%p22) target = $region8
    $region5: #{tpu_custom_call.1} parent=1 // loop_body
      %s26 = ssub.s32 %s21, 1
      %s27 = ssub.s32 %s21, 2
      %s34 = sadd.s32 1, %s29
      %p35 = scmp.ge.s32.totalorder %s34, 4
      %s36 = scalar_select %p35, 0, %s34
      %s37 = sadd.s32 1, %s28
      %s38 = scalar_select %p35, %s37, %s28
      %p39 = scmp.ge.s32.totalorder %s38, 2
      %s40 = scalar_select %p39, 0, %s38
      %s41 = ssub.s32 %s28, %s40
      %s42 = ssub.s32 %s29, %s36
      %s43 = sor.u32 %s41, %s42
      %p44 = scmp.eq.s32.totalorder %s43, 0
      %s46 = sadd.s32 %s45, 1
      %s47 = scalar_select %p44, %s45, %s46
      %p50 = pneg %p44
      %p51 = scmp.eq.s32.totalorder %s21, 7
      %p52 = por %p50, %p51
      %p53 = scmp.ne.s32.totalorder %s45, %s48
      %p54 = scmp.eq.s32.totalorder %s21, 0
      %p55 = por %p53, %p54
      %p56 = scmp.ne.s32.totalorder %s45, %s48
      %p57 = scmp.eq.s32.totalorder %s26, 7
      %p58 = por %p56, %p57
      %p59 = scmp.ne.s32.totalorder %s48, %s49
      %p60 = scmp.eq.s32.totalorder %s26, 0
      %p61 = por %p59, %p60
      %p62 = scmp.ne.s32.totalorder %s48, %s49
      %p63 = scmp.eq.s32.totalorder %s27, 7
      %p64 = por %p62, %p63
      %p66 = scmp.ne.s32.totalorder %s49, %s65
      %p67 = scmp.eq.s32.totalorder %s27, 0
      %p68 = por %p66, %p67
      %s70 = sadd.s32 %s69, 1
      %p73 = scmp.eq.s32.totalorder %s21, 7
      %p74 = scmp.ne.s32.totalorder %s69, %s71
      %p75 = scmp.eq.s32.totalorder %s21, 0
      %p76 = por %p74, %p75
      %p77 = scmp.ne.s32.totalorder %s69, %s71
      %p78 = scmp.eq.s32.totalorder %s26, 7
      %p79 = por %p77, %p78
      %p80 = scmp.ne.s32.totalorder %s71, %s72
      %p81 = scmp.eq.s32.totalorder %s26, 0
      %p82 = por %p80, %p81
      %p83 = scmp.ne.s32.totalorder %s71, %s72
      %p84 = scmp.eq.s32.totalorder %s27, 7
      %p85 = por %p83, %p84
      %p87 = scmp.ne.s32.totalorder %s72, %s86
      %p88 = scmp.eq.s32.totalorder %s27, 0
      %p89 = por %p87, %p88
      %s91 = sadd.s32 %s90, 1
      %p94 = scmp.eq.s32.totalorder %s21, 7
      %p95 = scmp.ne.s32.totalorder %s90, %s92
      %p96 = scmp.eq.s32.totalorder %s21, 0
      %p97 = por %p95, %p96
      %p98 = scmp.ne.s32.totalorder %s90, %s92
      %p99 = scmp.eq.s32.totalorder %s26, 7
      %p100 = por %p98, %p99
      %p101 = scmp.ne.s32.totalorder %s92, %s93
      %p102 = scmp.eq.s32.totalorder %s26, 0
      %p103 = por %p101, %p102
      %p104 = scmp.ne.s32.totalorder %s92, %s93
      %p105 = scmp.eq.s32.totalorder %s27, 7
      %p106 = por %p104, %p105
      %p108 = scmp.ne.s32.totalorder %s93, %s107
      %p109 = scmp.eq.s32.totalorder %s27, 0
      %p110 = por %p108, %p109
      %s111 = ssub.s32 %s28, %s40
      %p112 = scmp.eq.s32.totalorder %s111, 0
      %s114 = sadd.s32 %s113, 1
      %s115 = scalar_select %p112, %s113, %s114
      %p118 = pneg %p112
      %p119 = scmp.eq.s32.totalorder %s21, 7
      %p120 = por %p118, %p119
      %p121 = scmp.ne.s32.totalorder %s113, %s116
      %p122 = scmp.eq.s32.totalorder %s21, 0
      %p123 = por %p121, %p122
      %p124 = scmp.ne.s32.totalorder %s113, %s116
      %p125 = scmp.eq.s32.totalorder %s26, 7
      %p126 = por %p124, %p125
      %p127 = scmp.ne.s32.totalorder %s116, %s117
      %p128 = scmp.eq.s32.totalorder %s26, 0
      %p129 = por %p127, %p128
      %p130 = scmp.ne.s32.totalorder %s116, %s117
      %p131 = scmp.eq.s32.totalorder %s27, 7
      %p132 = por %p130, %p131
      %p134 = scmp.ne.s32.totalorder %s117, %s133
      %p135 = scmp.eq.s32.totalorder %s27, 0
      %p136 = por %p134, %p135
      %s137 = ssub.s32 %s28, %s40
      %p138 = scmp.eq.s32.totalorder %s137, 0
      %s140 = sadd.s32 %s139, 1
      %s141 = scalar_select %p138, %s139, %s140
      %p144 = pneg %p138
      %p145 = scmp.eq.s32.totalorder %s21, 7
      %p146 = por %p144, %p145
      %p147 = scmp.ne.s32.totalorder %s139, %s142
      %p148 = scmp.eq.s32.totalorder %s21, 0
      %p149 = por %p147, %p148
      %p150 = scmp.ne.s32.totalorder %s139, %s142
      %p151 = scmp.eq.s32.totalorder %s26, 7
      %p152 = por %p150, %p151
      %p153 = scmp.ne.s32.totalorder %s142, %s143
      %p154 = scmp.eq.s32.totalorder %s26, 0
      %p155 = por %p153, %p154
      %p156 = scmp.ne.s32.totalorder %s142, %s143
      %p157 = scmp.eq.s32.totalorder %s27, 7
      %p158 = por %p156, %p157
      %p160 = scmp.ne.s32.totalorder %s143, %s159
      %p161 = scmp.eq.s32.totalorder %s27, 0
      %p162 = por %p160, %p161
      %p163 = scmp.le.s32.totalorder 1, %s21
      %p164 = scmp.lt.s32.totalorder %s21, 9
      %p165 = pnand %p163, %p164
      %p166 = pneg %p165
      // Predicated region
      $region9: #{tpu_custom_call.1} parent=5 // pred_check
        _
      $region10: #{tpu_custom_call.1} parent=5 // pred_check_branch
        %168 = sbr.rel (%p165) target = $region12
      $region11: #{tpu_custom_call.1} parent=5 // pred_region
        %s169 = ssub.s32 %s21, 1
        // Predicated region
        $region13: #{tpu_custom_call.1} parent=11 // pred_check
          %p170 = pneg %p82
        $region14: #{tpu_custom_call.1} parent=11 // pred_check_branch
          %172 = sbr.rel (%p170) target = $region16
        $region15: #{tpu_custom_call.1} parent=11 // pred_region
          %s174 = ssub.s32 4096, 4096
          %175 = vsyncadd [#allocation7], %s174
          %s176 = sshll.u32 [#allocation6], 4
          %s177 = int_to_ptr.vmem [resolvable:$true] %s176
          %182 = dma.hbm_to_vmem [thread:$0]  %s1, 4096, %s177, [#allocation7], 256, 256, 16
        $region16: #{tpu_custom_call.1} parent=11 // pred_fallthru
          _
        // Predicated region
        $region17: #{tpu_custom_call.1} parent=11 // pred_check
          %p183 = pneg %p103
        $region18: #{tpu_custom_call.1} parent=11 // pred_check_branch
          %185 = sbr.rel (%p183) target = $region20
        $region19: #{tpu_custom_call.1} parent=11 // pred_region
          %s187 = ssub.s32 32, 32
          %188 = vsyncadd [#allocation7], %s187
          %s190 = sshll.u32 [#allocation8], 4
          %s191 = int_to_ptr.vmem [resolvable:$true] %s190
          %193 = dma.hbm_to_vmem [thread:$0]  %s2, 32, %s191, [#allocation7]
        $region20: #{tpu_custom_call.1} parent=11 // pred_fallthru
          _
      $region12: #{tpu_custom_call.1} parent=5 // pred_fallthru
        _
      %p194 = scmp.lt.s32.totalorder %s21, 8
      // Predicated region
      $region21: #{tpu_custom_call.1} parent=5 // pred_check
        %p195 = pneg %p194
      $region22: #{tpu_custom_call.1} parent=5 // pred_check_branch
        %197 = sbr.rel (%p195) target = $region24
      $region23: #{tpu_custom_call.1} parent=5 // pred_region
        // Predicated region
        $region25: #{tpu_custom_call.1} parent=23 // pred_check
          %p198 = pneg %p55
        $region26: #{tpu_custom_call.1} parent=23 // pred_check_branch
          %200 = sbr.rel (%p198) target = $region28
        $region27: #{tpu_custom_call.1} parent=23 // pred_region
          #allocation13 [shape = 'u32[6]{0}', space=smem, size = 0x18, scoped, tag = 'DMA stride descriptor']
          %s201 = sand.u32 %s45, 1
          %s202 = scalar_lea.sflag [#allocation4], %s201
          %s203 = sand.u32 %s45, 1
          %s204 = smul.addr %s203, 512
          %s205 = scalar_lea.vmem [#allocation3], %s204
          %s206 = smul.u32 8, %s28
          %s207 = smul.u32 8, %s29
          %s209 = ssub.s32 8192, 8192
          %210 = vsyncadd %s202, %s209
          %s211 = smul.addr %s206, 32
          %s212 = sadd.s32 %s207, %s211
          %s213 = smul.addr %s212, 128
          %s214 = scalar_lea.hbm %s0, %s213
          %s216 = sshll.u32 1, 14
          %s217 = sxor.u32 4294967295, %s216
          %s219 = sld [smem:[#allocation0]]
          %s220 = sadd.s32 2, %s219
          %s222 = sshll.u32 7, 26
          %s223 = sxor.u32 4294967295, %s222
          %s224 = sand.u32 0, %s223
          %s225 = sshll.u32 %s220, 26
          %s226 = sor.u32 %s224, %s225
          %s227 = sshll.u32 %s205, 4
          %s228 = int_to_ptr.vmem [resolvable:$true] %s227
          %234 = sst [smem:[#allocation13]] 4096
          %s235 = scalar_lea.smem [#allocation13], 1
          %236 = sst [smem:[%s235]] 1024
          %s237 = scalar_lea.smem [#allocation13], 2
          %238 = sst [smem:[%s237]] 8
          %s239 = scalar_lea.smem [#allocation13], 3
          %240 = sst [smem:[%s239]] 128
          %s241 = scalar_lea.smem [#allocation13], 4
          %242 = sst [smem:[%s241]] 128
          %s243 = scalar_lea.smem [#allocation13], 5
          %244 = sst [smem:[%s243]] 8
          %246 = dma.general %s214, 8192, %s228, %s202, [#allocation12], [#allocation13], %s226, 0
        $region28: #{tpu_custom_call.1} parent=23 // pred_fallthru
          _
      $region24: #{tpu_custom_call.1} parent=5 // pred_fallthru
        _
      %p247 = scmp.le.s32.totalorder 1, %s21
      %p248 = scmp.lt.s32.totalorder %s21, 9
      %p249 = pnand %p247, %p248
      %p250 = pneg %p249
      // Predicated region
      $region29: #{tpu_custom_call.1} parent=5 // pred_check
        _
      $region30: #{tpu_custom_call.1} parent=5 // pred_check_branch
        %252 = sbr.rel (%p249) target = $region32
      $region31: #{tpu_custom_call.1} parent=5 // pred_region
        %s253 = ssub.s32 %s21, 1
        %s254 = sand.u32 %s48, 1
        %s255 = scalar_lea.sflag [#allocation4], %s254
        %s256 = sand.u32 %s48, 1
        %s257 = smul.addr %s256, 512
        %s258 = scalar_lea.vmem [#allocation3], %s257
        // Predicated region
        $region33: #{tpu_custom_call.1} parent=31 // pred_check
          %p259 = pneg %p61
        $region34: #{tpu_custom_call.1} parent=31 // pred_check_branch
          %261 = sbr.rel (%p259) target = $region36
        $region35: #{tpu_custom_call.1} parent=31 // pred_region
          %262 = dma.done %s255, 8192
        $region36: #{tpu_custom_call.1} parent=31 // pred_fallthru
          _
        // Predicated region
        $region37: #{tpu_custom_call.1} parent=31 // pred_check
          %p263 = pneg %p82
        $region38: #{tpu_custom_call.1} parent=31 // pred_check_branch
          %265 = sbr.rel (%p263) target = $region40
        $region39: #{tpu_custom_call.1} parent=31 // pred_region
          %266 = dma.done [#allocation7], 4096
        $region40: #{tpu_custom_call.1} parent=31 // pred_fallthru
          _
        // Predicated region
        $region41: #{tpu_custom_call.1} parent=31 // pred_check
          %p267 = pneg %p103
        $region42: #{tpu_custom_call.1} parent=31 // pred_check_branch
          %269 = sbr.rel (%p267) target = $region44
        $region43: #{tpu_custom_call.1} parent=31 // pred_region
          %270 = dma.done [#allocation7], 32
        $region44: #{tpu_custom_call.1} parent=31 // pred_fallthru
          _
        %s271 = sand.u32 %s48, 1
        %s272 = scalar_lea.sflag [#allocation4], %s271
        %s273 = sand.u32 %s48, 1
        %s274 = smul.addr %s273, 512
        %s275 = scalar_lea.vmem [#allocation3], %s274
        %p276 = pneg %p61
        %p277 = pneg %p58
        %p278 = pneg %p82
        %p279 = pneg %p79
        %p280 = pneg %p103
        %p281 = pneg %p100
        %p282 = pneg %p129
        %p283 = pneg %p126
        %s284 = sand.u32 %s116, 1
        %s285 = scalar_lea.sflag [#allocation5], %s284
        %s286 = sand.u32 %s116, 1
        %s287 = smul.addr %s286, 8
        %s288 = scalar_lea.vmem [#allocation9], %s287
        %p289 = pneg %p155
        %p290 = pneg %p152
        %s291 = sand.u32 %s142, 1
        %s292 = scalar_lea.sflag [#allocation11], %s291
        %s293 = sand.u32 %s142, 1
        %s294 = smul.addr %s293, 8
        %s295 = scalar_lea.vmem [#allocation10], %s294
        %s296 = smul.u32 8, %s30
        %s297 = smul.u32 8, %s31
        %p298 = scmp.eq.s32.totalorder %s31, 0
        // Predicated region
        $region45: #{tpu_custom_call.1} parent=31 // pred_check
          %p299 = pneg %p298
        $region46: #{tpu_custom_call.1} parent=31 // pred_check_branch
          %301 = sbr.rel (%p299) target = $region48
        $region47: #{tpu_custom_call.1} parent=31 // pred_region
          %302 = vst [vmem:[#allocation2] sm:$0xff] 0.0
        $region48: #{tpu_custom_call.1} parent=31 // pred_fallthru
          _
        %v303 = vld [vmem:[#allocation2] sm:$0xff]
        %v304 = vld [vmem:[%s258] sm:$0xff]
        %v305 = vld [vmem:[%s258 + $0x8] sm:$0xff]
        %v306 = vld [vmem:[%s258 + $0x10] sm:$0xff]
        %v307 = vld [vmem:[%s258 + $0x18] sm:$0xff]
        %v308 = vld [vmem:[%s258 + $0x20] sm:$0xff]
        %v309 = vld [vmem:[%s258 + $0x28] sm:$0xff]
        %v310 = vld [vmem:[%s258 + $0x30] sm:$0xff]
        %v311 = vld [vmem:[%s258 + $0x38] sm:$0xff]
        %v312 = vld [vmem:[%s258 + $0x40] sm:$0xff]
        %v313 = vld [vmem:[%s258 + $0x48] sm:$0xff]
        %v314 = vld [vmem:[%s258 + $0x50] sm:$0xff]
        %v315 = vld [vmem:[%s258 + $0x58] sm:$0xff]
        %v316 = vld [vmem:[%s258 + $0x60] sm:$0xff]
        %v317 = vld [vmem:[%s258 + $0x68] sm:$0xff]
        %v318 = vld [vmem:[%s258 + $0x70] sm:$0xff]
        %v319 = vld [vmem:[%s258 + $0x78] sm:$0xff]
        %v320 = vld [vmem:[%s258 + $0x80] sm:$0xff]
        %v321 = vld [vmem:[%s258 + $0x88] sm:$0xff]
        %v322 = vld [vmem:[%s258 + $0x90] sm:$0xff]
        %v323 = vld [vmem:[%s258 + $0x98] sm:$0xff]
        %v324 = vld [vmem:[%s258 + $0xa0] sm:$0xff]
        %v325 = vld [vmem:[%s258 + $0xa8] sm:$0xff]
        %v326 = vld [vmem:[%s258 + $0xb0] sm:$0xff]
        %v327 = vld [vmem:[%s258 + $0xb8] sm:$0xff]
        %v328 = vld [vmem:[%s258 + $0xc0] sm:$0xff]
        %v329 = vld [vmem:[%s258 + $0xc8] sm:$0xff]
        %v330 = vld [vmem:[%s258 + $0xd0] sm:$0xff]
        %v331 = vld [vmem:[%s258 + $0xd8] sm:$0xff]
        %v332 = vld [vmem:[%s258 + $0xe0] sm:$0xff]
        %v333 = vld [vmem:[%s258 + $0xe8] sm:$0xff]
        %v334 = vld [vmem:[%s258 + $0xf0] sm:$0xff]
        %v335 = vld [vmem:[%s258 + $0xf8] sm:$0xff]
        %v336 = vld [vmem:[%s258 + $0x100] sm:$0xff]
        %v337 = vld [vmem:[%s258 + $0x108] sm:$0xff]
        %v338 = vld [vmem:[%s258 + $0x110] sm:$0xff]
        %v339 = vld [vmem:[%s258 + $0x118] sm:$0xff]
        %v340 = vld [vmem:[%s258 + $0x120] sm:$0xff]
        %v341 = vld [vmem:[%s258 + $0x128] sm:$0xff]
        %v342 = vld [vmem:[%s258 + $0x130] sm:$0xff]
        %v343 = vld [vmem:[%s258 + $0x138] sm:$0xff]
        %v344 = vld [vmem:[%s258 + $0x140] sm:$0xff]
        %v345 = vld [vmem:[%s258 + $0x148] sm:$0xff]
        %v346 = vld [vmem:[%s258 + $0x150] sm:$0xff]
        %v347 = vld [vmem:[%s258 + $0x158] sm:$0xff]
        %v348 = vld [vmem:[%s258 + $0x160] sm:$0xff]
        %v349 = vld [vmem:[%s258 + $0x168] sm:$0xff]
        %v350 = vld [vmem:[%s258 + $0x170] sm:$0xff]
        %v351 = vld [vmem:[%s258 + $0x178] sm:$0xff]
        %v352 = vld [vmem:[%s258 + $0x180] sm:$0xff]
        %v353 = vld [vmem:[%s258 + $0x188] sm:$0xff]
        %v354 = vld [vmem:[%s258 + $0x190] sm:$0xff]
        %v355 = vld [vmem:[%s258 + $0x198] sm:$0xff]
        %v356 = vld [vmem:[%s258 + $0x1a0] sm:$0xff]
        %v357 = vld [vmem:[%s258 + $0x1a8] sm:$0xff]
        %v358 = vld [vmem:[%s258 + $0x1b0] sm:$0xff]
        %v359 = vld [vmem:[%s258 + $0x1b8] sm:$0xff]
        %v360 = vld [vmem:[%s258 + $0x1c0] sm:$0xff]
        %v361 = vld [vmem:[%s258 + $0x1c8] sm:$0xff]
        %v362 = vld [vmem:[%s258 + $0x1d0] sm:$0xff]
        %v363 = vld [vmem:[%s258 + $0x1d8] sm:$0xff]
        %v364 = vld [vmem:[%s258 + $0x1e0] sm:$0xff]
        %v365 = vld [vmem:[%s258 + $0x1e8] sm:$0xff]
        %v366 = vld [vmem:[%s258 + $0x1f0] sm:$0xff]
        %v367 = vld [vmem:[%s258 + $0x1f8] sm:$0xff]
        %v368 = vadd.f32 %v304, %v305
        %v369 = vadd.f32 %v368, %v306
        %v370 = vadd.f32 %v369, %v307
        %v371 = vadd.f32 %v370, %v308
        %v372 = vadd.f32 %v371, %v309
        %v373 = vadd.f32 %v372, %v310
        %v374 = vadd.f32 %v373, %v311
        %v375 = vrot.slane %v374, 4
        %v376 = vadd.f32 %v374, %v375
        %v377 = vrot.slane %v376, 2
        %v378 = vadd.f32 %v376, %v377
        %v379 = vrot.slane %v378, 1
        %v380 = vadd.f32 %v378, %v379
        %v381 = vadd.f32 %v312, %v313
        %v382 = vadd.f32 %v381, %v314
        %v383 = vadd.f32 %v382, %v315
        %v384 = vadd.f32 %v383, %v316
        %v385 = vadd.f32 %v384, %v317
        %v386 = vadd.f32 %v385, %v318
        %v387 = vadd.f32 %v386, %v319
        %v388 = vrot.slane %v387, 4
        %v389 = vadd.f32 %v387, %v388
        %v390 = vrot.slane %v389, 2
        %v391 = vadd.f32 %v389, %v390
        %v392 = vrot.slane %v391, 1
        %v393 = vadd.f32 %v391, %v392
        %v394 = vadd.f32 %v320, %v321
        %v395 = vadd.f32 %v394, %v322
        %v396 = vadd.f32 %v395, %v323
        %v397 = vadd.f32 %v396, %v324
        %v398 = vadd.f32 %v397, %v325
        %v399 = vadd.f32 %v398, %v326
        %v400 = vadd.f32 %v399, %v327
        %v401 = vrot.slane %v400, 4
        %v402 = vadd.f32 %v400, %v401
        %v403 = vrot.slane %v402, 2
        %v404 = vadd.f32 %v402, %v403
        %v405 = vrot.slane %v404, 1
        %v406 = vadd.f32 %v404, %v405
        %v407 = vadd.f32 %v328, %v329
        %v408 = vadd.f32 %v407, %v330
        %v409 = vadd.f32 %v408, %v331
        %v410 = vadd.f32 %v409, %v332
        %v411 = vadd.f32 %v410, %v333
        %v412 = vadd.f32 %v411, %v334
        %v413 = vadd.f32 %v412, %v335
        %v414 = vrot.slane %v413, 4
        %v415 = vadd.f32 %v413, %v414
        %v416 = vrot.slane %v415, 2
        %v417 = vadd.f32 %v415, %v416
        %v418 = vrot.slane %v417, 1
        %v419 = vadd.f32 %v417, %v418
        %v420 = vadd.f32 %v336, %v337
        %v421 = vadd.f32 %v420, %v338
        %v422 = vadd.f32 %v421, %v339
        %v423 = vadd.f32 %v422, %v340
        %v424 = vadd.f32 %v423, %v341
        %v425 = vadd.f32 %v424, %v342
        %v426 = vadd.f32 %v425, %v343
        %v427 = vrot.slane %v426, 4
        %v428 = vadd.f32 %v426, %v427
        %v429 = vrot.slane %v428, 2
        %v430 = vadd.f32 %v428, %v429
        %v431 = vrot.slane %v430, 1
        %v432 = vadd.f32 %v430, %v431
        %v433 = vadd.f32 %v344, %v345
        %v434 = vadd.f32 %v433, %v346
        %v435 = vadd.f32 %v434, %v347
        %v436 = vadd.f32 %v435, %v348
        %v437 = vadd.f32 %v436, %v349
        %v438 = vadd.f32 %v437, %v350
        %v439 = vadd.f32 %v438, %v351
        %v440 = vrot.slane %v439, 4
        %v441 = vadd.f32 %v439, %v440
        %v442 = vrot.slane %v441, 2
        %v443 = vadd.f32 %v441, %v442
        %v444 = vrot.slane %v443, 1
        %v445 = vadd.f32 %v443, %v444
        %v446 = vadd.f32 %v352, %v353
        %v447 = vadd.f32 %v446, %v354
        %v448 = vadd.f32 %v447, %v355
        %v449 = vadd.f32 %v448, %v356
        %v450 = vadd.f32 %v449, %v357
        %v451 = vadd.f32 %v450, %v358
        %v452 = vadd.f32 %v451, %v359
        %v453 = vrot.slane %v452, 4
        %v454 = vadd.f32 %v452, %v453
        %v455 = vrot.slane %v454, 2
        %v456 = vadd.f32 %v454, %v455
        %v457 = vrot.slane %v456, 1
        %v458 = vadd.f32 %v456, %v457
        %v459 = vadd.f32 %v360, %v361
        %v460 = vadd.f32 %v459, %v362
        %v461 = vadd.f32 %v460, %v363
        %v462 = vadd.f32 %v461, %v364
        %v463 = vadd.f32 %v462, %v365
        %v464 = vadd.f32 %v463, %v366
        %v465 = vadd.f32 %v464, %v367
        %v466 = vrot.slane %v465, 4
        %v467 = vadd.f32 %v465, %v466
        %v468 = vrot.slane %v467, 2
        %v469 = vadd.f32 %v467, %v468
        %v470 = vrot.slane %v469, 1
        %v471 = vadd.f32 %v469, %v470
        %vm480 = vcmask 1041409
        %v481 = vsel %vm480, %v393, %v380
        %vm482 = vcmask 1042434
        %v483 = vsel %vm482, %v406, %v481
        %vm484 = vcmask 1043459
        %v485 = vsel %vm484, %v419, %v483
        %vm486 = vcmask 1044484
        %v487 = vsel %vm486, %v432, %v485
        %vm488 = vcmask 1045509
        %v489 = vsel %vm488, %v445, %v487
        %vm490 = vcmask 1046534
        %v491 = vsel %vm490, %v458, %v489
        %vm492 = vcmask 1047559
        %v493 = vsel %vm492, %v471, %v491
        %v495 = vadd.f32 %v303, %v493
        %496 = vst [vmem:[#allocation2] sm:$0xff] %v495
        %p497 = scmp.eq.s32.totalorder %s31, 3
        // Predicated region
        $region49: #{tpu_custom_call.1} parent=31 // pred_check
          %p498 = pneg %p497
        $region50: #{tpu_custom_call.1} parent=31 // pred_check_branch
          %500 = sbr.rel (%p498) target = $region52
        $region51: #{tpu_custom_call.1} parent=31 // pred_region
          %v501 = vld [vmem:[#allocation2] sm:$0xff]
          %v502 = vmul.f32 %v501, 0.00390625
          %v503 = vld [vmem:[#allocation6] sm:$0xff]
          %v504 = vld [vmem:[#allocation6 + $0x8] sm:$0xff]
          %v505 = vld [vmem:[#allocation6 + $0x10] sm:$0xff]
          %v506 = vld [vmem:[#allocation6 + $0x18] sm:$0xff]
          %v507 = vld [vmem:[#allocation6 + $0x20] sm:$0xff]
          %v508 = vld [vmem:[#allocation6 + $0x28] sm:$0xff]
          %v509 = vld [vmem:[#allocation6 + $0x30] sm:$0xff]
          %v510 = vld [vmem:[#allocation6 + $0x38] sm:$0xff]
          %v511 = vld [vmem:[#allocation6 + $0x40] sm:$0xff]
          %v512 = vld [vmem:[#allocation6 + $0x48] sm:$0xff]
          %v513 = vld [vmem:[#allocation6 + $0x50] sm:$0xff]
          %v514 = vld [vmem:[#allocation6 + $0x58] sm:$0xff]
          %v515 = vld [vmem:[#allocation6 + $0x60] sm:$0xff]
          %v516 = vld [vmem:[#allocation6 + $0x68] sm:$0xff]
          %v517 = vld [vmem:[#allocation6 + $0x70] sm:$0xff]
          %v518 = vld [vmem:[#allocation6 + $0x78] sm:$0xff]
          %v519 = vld [vmem:[#allocation6 + $0x80] sm:$0xff]
          %v520 = vld [vmem:[#allocation6 + $0x88] sm:$0xff]
          %v521 = vld [vmem:[#allocation6 + $0x90] sm:$0xff]
          %v522 = vld [vmem:[#allocation6 + $0x98] sm:$0xff]
          %v523 = vld [vmem:[#allocation6 + $0xa0] sm:$0xff]
          %v524 = vld [vmem:[#allocation6 + $0xa8] sm:$0xff]
          %v525 = vld [vmem:[#allocation6 + $0xb0] sm:$0xff]
          %v526 = vld [vmem:[#allocation6 + $0xb8] sm:$0xff]
          %v527 = vld [vmem:[#allocation6 + $0xc0] sm:$0xff]
          %v528 = vld [vmem:[#allocation6 + $0xc8] sm:$0xff]
          %v529 = vld [vmem:[#allocation6 + $0xd0] sm:$0xff]
          %v530 = vld [vmem:[#allocation6 + $0xd8] sm:$0xff]
          %v531 = vld [vmem:[#allocation6 + $0xe0] sm:$0xff]
          %v532 = vld [vmem:[#allocation6 + $0xe8] sm:$0xff]
          %v533 = vld [vmem:[#allocation6 + $0xf0] sm:$0xff]
          %v534 = vld [vmem:[#allocation6 + $0xf8] sm:$0xff]
          %v535 = vld [vmem:[#allocation8] sm:$0x3]
          %v537 = vlaneseq
          %v538 = vshrl.u32 %v537, 7
          %v539 = vsub.s32 0, %v538
          %v540 = vrot.slane %v535, %v539
          %v541 = vlaneseq
          %v542 = vshrl.u32 %v541, 7
          %v543 = vsub.s32 1, %v542
          %v544 = vrot.slane %v535, %v543
          %547 = vmatprep.subr.mxu0 %v504
          %548 = vmatpush1.msra.mxu0 %v503
          %549 = vmatprep.subr.mxu0 %v506
          %550 = vmatpush1.msra.mxu0 %v505
          %551 = vmatprep.subr.mxu0 %v508
          %552 = vmatpush1.msra.mxu0 %v507
          %553 = vmatprep.subr.mxu0 %v510
          %554 = vmatpush1.msra.mxu0 %v509
          %555 = vmatprep.subr.mxu0 %v512
          %556 = vmatpush1.msra.mxu0 %v511
          %557 = vmatprep.subr.mxu0 %v514
          %558 = vmatpush1.msra.mxu0 %v513
          %559 = vmatprep.subr.mxu0 %v516
          %560 = vmatpush1.msra.mxu0 %v515
          %561 = vmatprep.subr.mxu0 %v518
          %562 = vmatpush1.msra.mxu0 %v517
          %563 = vmatprep.subr.mxu0 %v520
          %564 = vmatpush1.msra.mxu0 %v519
          %565 = vmatprep.subr.mxu0 %v522
          %566 = vmatpush1.msra.mxu0 %v521
          %567 = vmatprep.subr.mxu0 %v524
          %568 = vmatpush1.msra.mxu0 %v523
          %569 = vmatprep.subr.mxu0 %v526
          %570 = vmatpush1.msra.mxu0 %v525
          %571 = vmatprep.subr.mxu0 %v528
          %572 = vmatpush1.msra.mxu0 %v527
          %573 = vmatprep.subr.mxu0 %v530
          %574 = vmatpush1.msra.mxu0 %v529
          %575 = vmatprep.subr.mxu0 %v532
          %576 = vmatpush1.msra.mxu0 %v531
          %577 = vmatprep.subr.mxu0 %v534
          %578 = vmatpush1.msra.mxu0 %v533
          %579 = vmatprep.subr.mxu0 0.0
          %580 = vmatpush1.msra.mxu0 0.0
          %581 = vmatprep.subr.mxu0 0.0
          %582 = vmatpush1.msra.mxu0 0.0
          %583 = vmatprep.subr.mxu0 0.0
          %584 = vmatpush1.msra.mxu0 0.0
          %585 = vmatprep.subr.mxu0 0.0
          %586 = vmatpush1.msra.mxu0 0.0
          %587 = vmatprep.subr.mxu0 0.0
          %588 = vmatpush1.msra.mxu0 0.0
          %589 = vmatprep.subr.mxu0 0.0
          %590 = vmatpush1.msra.mxu0 0.0
          %591 = vmatprep.subr.mxu0 0.0
          %592 = vmatpush1.msra.mxu0 0.0
          %593 = vmatprep.subr.mxu0 0.0
          %594 = vmatpush1.msra.mxu0 0.0
          %595 = vmatprep.subr.mxu0 0.0
          %596 = vmatpush1.msra.mxu0 0.0
          %597 = vmatprep.subr.mxu0 0.0
          %598 = vmatpush1.msra.mxu0 0.0
          %599 = vmatprep.subr.mxu0 0.0
          %600 = vmatpush1.msra.mxu0 0.0
          %601 = vmatprep.subr.mxu0 0.0
          %602 = vmatpush1.msra.mxu0 0.0
          %603 = vmatprep.subr.mxu0 0.0
          %604 = vmatpush1.msra.mxu0 0.0
          %605 = vmatprep.subr.mxu0 0.0
          %606 = vmatpush1.msra.mxu0 0.0
          %607 = vmatprep.subr.mxu0 0.0
          %608 = vmatpush1.msra.mxu0 0.0
          %609 = vmatprep.subr.mxu0 0.0
          %610 = vmatpush1.msra.mxu0 0.0
          %611 = vmatprep.mubr.f32.mxu0 0.0
          %612 = vmatmul.mubr.f32.gmra.mrb[0].mxu0 %v502
          %v613 = vpop.f32.mrb[0].mxu0
          %v614 = vadd.f32 %v540, %v613
          %v615 = vpop.f32.mrb[0].mxu0
          %v616 = vadd.f32 %v544, %v615
          %617 = vdwg.mxu0
          %v618 = vand.u32 2147483647, %v614
          %v619 = vand.u32 2147483647, %v616
          %v620 = vsub.f32 0.0, %v618
          %v621 = vsub.f32 0.0, %v619
          %v622 = vmul.f32 %v620, 1.442695
          %v623 = vpow.pop %v622
          %v624 = vmul.f32 %v621, 1.442695
          %v625 = vpow.pop %v624
          %v626 = vadd.f32 %v623, 1.0
          %v627 = vlog2.pop %v626
          %v628 = vmul.f32 %v627, 0.6931472
          %v629 = vmul.f32 -0.5, %v623
          %v630 = vadd.f32 %v629, 1.0
          %v631 = vmul.f32 %v630, %v623
          %v632 = vand.u32 2147483647, %v623
          %vm633 = vcmp.lt.f32.partialorder %v632, 0.0004427343
          %v634 = vsel %vm633, %v631, %v628
          %v635 = vadd.f32 %v625, 1.0
          %v636 = vlog2.pop %v635
          %v637 = vmul.f32 %v636, 0.6931472
          %v638 = vmul.f32 -0.5, %v625
          %v639 = vadd.f32 %v638, 1.0
          %v640 = vmul.f32 %v639, %v625
          %v641 = vand.u32 2147483647, %v625
          %vm642 = vcmp.lt.f32.partialorder %v641, 0.0004427343
          %v643 = vsel %vm642, %v640, %v637
          %v644 = vmax.f32 %v614, 0.0
          %v645 = vmax.f32 %v616, 0.0
          %v646 = vadd.f32 %v634, %v644
          %v647 = vadd.f32 %v643, %v645
          %v648 = vtanh.pop %v646
          %v649 = vtanh.pop %v647
          %v650 = vmul.f32 %v614, %v648
          %v651 = vmul.f32 %v616, %v649
          %v652 = vadd.f32 %v650, %v502
          %v653 = vadd.f32 %v651, %v502
          %v654 = vmul.f32 %v652, %v652
          %655 = vadd.xlane.f32.xlu0 %v654
          %v656 = vpop.xlane.xlu0 %655
          %v657 = vrsqrt.pop %v656
          %v658 = vmul.f32 %v652, %v657
          %v659 = vmul.f32 %v653, %v653
          %660 = vadd.xlane.f32.xlu0 %v659
          %v661 = vpop.xlane.xlu0 %660
          %v662 = vrsqrt.pop %v661
          %v663 = vmul.f32 %v653, %v662
          %664 = vst [vmem:[%s288] sm:$0xff] %v658
          %665 = vst [vmem:[%s295] sm:$0xff] %v663
        $region52: #{tpu_custom_call.1} parent=31 // pred_fallthru
          _
        %s666 = sand.u32 %s116, 1
        %s667 = scalar_lea.sflag [#allocation5], %s666
        %s668 = sand.u32 %s116, 1
        %s669 = smul.addr %s668, 8
        %s670 = scalar_lea.vmem [#allocation9], %s669
        %s671 = sand.u32 %s142, 1
        %s672 = scalar_lea.sflag [#allocation11], %s671
        %s673 = sand.u32 %s142, 1
        %s674 = smul.addr %s673, 8
        %s675 = scalar_lea.vmem [#allocation10], %s674
        // Predicated region
        $region53: #{tpu_custom_call.1} parent=31 // pred_check
          %p676 = pneg %p126
        $region54: #{tpu_custom_call.1} parent=31 // pred_check_branch
          %678 = sbr.rel (%p676) target = $region56
        $region55: #{tpu_custom_call.1} parent=31 // pred_region
          %s680 = ssub.s32 128, 128
          %681 = vsyncadd %s667, %s680
          %s682 = smul.addr %s30, 128
          %s683 = scalar_lea.hbm %s3, %s682
          %s685 = sshll.u32 %s670, 4
          %s686 = int_to_ptr.vmem [resolvable:$true] %s685
          %688 = dma.vmem_to_hbm [thread:$0]  %s686, 128, %s683, %s667
        $region56: #{tpu_custom_call.1} parent=31 // pred_fallthru
          _
        // Predicated region
        $region57: #{tpu_custom_call.1} parent=31 // pred_check
          %p689 = pneg %p152
        $region58: #{tpu_custom_call.1} parent=31 // pred_check_branch
          %691 = sbr.rel (%p689) target = $region60
        $region59: #{tpu_custom_call.1} parent=31 // pred_region
          %s693 = ssub.s32 128, 128
          %694 = vsyncadd %s672, %s693
          %s695 = smul.addr %s30, 128
          %s696 = scalar_lea.hbm %s4, %s695
          %s698 = sshll.u32 %s675, 4
          %s699 = int_to_ptr.vmem [resolvable:$true] %s698
          %701 = dma.vmem_to_hbm [thread:$0]  %s699, 128, %s696, %s672
        $region60: #{tpu_custom_call.1} parent=31 // pred_fallthru
          _
      $region32: #{tpu_custom_call.1} parent=5 // pred_fallthru
        _
      %p702 = scmp.le.s32.totalorder 2, %s21
      // Predicated region
      $region61: #{tpu_custom_call.1} parent=5 // pred_check
        %p703 = pneg %p702
      $region62: #{tpu_custom_call.1} parent=5 // pred_check_branch
        %705 = sbr.rel (%p703) target = $region64
      $region63: #{tpu_custom_call.1} parent=5 // pred_region
        %s706 = ssub.s32 %s21, 2
        // Predicated region
        $region65: #{tpu_custom_call.1} parent=63 // pred_check
          %p707 = pneg %p132
        $region66: #{tpu_custom_call.1} parent=63 // pred_check_branch
          %709 = sbr.rel (%p707) target = $region68
        $region67: #{tpu_custom_call.1} parent=63 // pred_region
          %s710 = sand.u32 %s117, 1
          %s711 = scalar_lea.sflag [#allocation5], %s710
          %s712 = sand.u32 %s117, 1
          %s713 = smul.addr %s712, 8
          %s714 = scalar_lea.vmem [#allocation9], %s713
          %715 = dma.done %s711, 128
        $region68: #{tpu_custom_call.1} parent=63 // pred_fallthru
          _
        // Predicated region
        $region69: #{tpu_custom_call.1} parent=63 // pred_check
          %p716 = pneg %p158
        $region70: #{tpu_custom_call.1} parent=63 // pred_check_branch
          %718 = sbr.rel (%p716) target = $region72
        $region71: #{tpu_custom_call.1} parent=63 // pred_region
          %s719 = sand.u32 %s143, 1
          %s720 = scalar_lea.sflag [#allocation11], %s719
          %s721 = sand.u32 %s143, 1
          %s722 = smul.addr %s721, 8
          %s723 = scalar_lea.vmem [#allocation10], %s722
          %724 = dma.done %s720, 128
        $region72: #{tpu_custom_call.1} parent=63 // pred_fallthru
          _
      $region64: #{tpu_custom_call.1} parent=5 // pred_fallthru
        _
    $region6: #{tpu_custom_call.1} parent=1 // loop_footer
      %s25 = sadd.s32 1, %s21
    $region7: #{tpu_custom_call.1} parent=1 // loop_footer_branch
      %20 = sbr.rel target = $region3
    $region8: #{tpu_custom_call.1} parent=1 // loop_exit
      _
    %725 = vsyncpa [#allocation4], 1
    %s726 = scalar_lea.sflag [#allocation4], 1
    %727 = vsyncpa %s726, 1
    %728 = vsyncpa [#allocation7], 1
    %729 = vsyncpa [#allocation5], 1
    %s730 = scalar_lea.sflag [#allocation5], 1
    %731 = vsyncpa %s730, 1
    %732 = vsyncpa [#allocation11], 1
    %s733 = scalar_lea.sflag [#allocation11], 1
    %734 = vsyncpa %s733, 1

</llo_original>
